<compile_context>
chip_gen: v7x
topology: tpu7x:2x2x1
jax: 0.10.0
libtpu: 0.0.40
codegen_flags: <defaults>
</compile_context>

<pallas_src>
import numpy as np
import jax
import jax.numpy as jnp
from jax.experimental import pallas as pl
from jax.experimental.pallas import tpu as pltpu

# ---- model hyperparameters (small, consistent with the module's forward) ----
VOCAB_SIZE = 50
EMBEDDING_DIM = 32
HIDDEN_DIM = 32
N_LAYERS = 2
OUTPUT_SIZE = 1
BATCH = 2
SEQ_LEN = 8

H = HIDDEN_DIM
G = 4 * H            # 128 lanes -> every matmul / store is lane-dense
G3 = 3 * H

# ---- param-slab row offsets (all multiples of 8 -> sublane-aligned slices) ----
GT_ROWS = 56                      # gate table: vocab 50 padded to 56 rows
WHH0_OFF = GT_ROWS                # 56
WIH1_OFF = WHH0_OFF + H           # 88
WHH1_OFF = WIH1_OFF + H           # 120
B1_OFF = WHH1_OFF + H             # 152  (bias row + 7 pad rows)
WFC_OFF = B1_OFF + 8              # 160
BFC_OFF = WFC_OFF + H             # 192  (bias row + 7 pad rows)
SLAB_ROWS = BFC_OFF + 8           # 200


# ----------------------------- Pallas kernel --------------------------------
def sentiment_rnn_kernel(tok_ref, slab_ref, hc0_ref, out_ref):
    """
    tok_ref : (B*T,) int32  SMEM  token ids, batch-major (index = b*T + t)
    slab_ref: (200, 128) f32 VMEM packed params:
              rows [0:56)    precomputed gate table  emb @ Wih0 + b0  (vocab rows)
              rows [56:88)   Whh0      rows [88:120) Wih1     rows [120:152) Whh1
              row  152       b1        rows [160:192) fc weight (col 0)
              row  192       fc bias (col 0)
    hc0_ref : (B, 4H) f32 VMEM  [h0_l0 | c0_l0 | h0_l1 | c0_l1]
    out_ref : (8, 128) f32 VMEM rows [0:B) = [hn_l0|cn_l0|hn_l1|cn_l1],
              rows [B:2B) col 0 = sigmoid(fc(h_T top layer)), rest zero.
    """
    B = hc0_ref.shape[0]
    T = tok_ref.shape[0] // B

    # ---- hoist all weight loads (static, sublane-aligned slices of the slab) ----
    whh0 = slab_ref[WHH0_OFF:WHH0_OFF + H, :]
    wih1 = slab_ref[WIH1_OFF:WIH1_OFF + H, :]
    whh1 = slab_ref[WHH1_OFF:WHH1_OFF + H, :]
    b1 = slab_ref[B1_OFF:B1_OFF + 1, :]
    wfc = slab_ref[WFC_OFF:WFC_OFF + H, :]
    bfc = slab_ref[BFC_OFF:BFC_OFF + 1, :]

    hc0 = hc0_ref[...]
    h0, c0 = hc0[:, 0:H], hc0[:, H:2 * H]
    h1, c1 = hc0[:, 2 * H:3 * H], hc0[:, 3 * H:G]

    # ---- fused embedding lookup: gather layer-0 input-side gates from the
    #      precomputed (vocab, 4H) table (no input matmul needed for layer 0) ----
    gx0_blocks = []
    for t in range(T):
        rows = [slab_ref[pl.ds(tok_ref[b * T + t], 1), :] for b in range(B)]
        gx0_blocks.append(jnp.concatenate(rows, axis=0))          # (B, 4H)

    def gates_to_hc(gates, c):
        # gate-column order [i, f, o, g]: one sigmoid over 3H lanes, one tanh over H
        sfo = jax.nn.sigmoid(gates[:, :G3])
        g = jnp.tanh(gates[:, G3:])
        i = sfo[:, 0:H]
        f = sfo[:, H:2 * H]
        o = sfo[:, 2 * H:G3]
        c_new = f * c + i * g
        h_new = o * jnp.tanh(c_new)
        return h_new, c_new

    # ---- layer 0: one recurrent matmul per step (fully unrolled) ----
    h, c = h0, c0
    h0_outs = []
    for t in range(T):
        gates = gx0_blocks[t] + jnp.dot(h, whh0, preferred_element_type=jnp.float32)
        h, c = gates_to_hc(gates, c)
        h0_outs.append(h)
    h0f, c0f = h, c

    # ---- layer-1 input-side gates: ONE batched MXU op on stacked layer-0 outputs ----
    h0_stack = jnp.concatenate(h0_outs, axis=0)                    # (T*B, H)
    gx1 = jnp.dot(h0_stack, wih1, preferred_element_type=jnp.float32) + b1  # (T*B, 4H)

    # ---- layer 1: one recurrent matmul per step (fully unrolled) ----
    # TODO(synk): inter-layer dropout (p=0.5) and self.dropout (p=0.3) are
    # eval/inference-mode identity here.
    h, c = h1, c1
    for t in range(T):
        gates = gx1[t * B:(t + 1) * B, :] + jnp.dot(h, whh1, preferred_element_type=jnp.float32)
        h, c = gates_to_hc(gates, c)
    h1f, c1f = h, c

    # ---- fc + sigmoid on the last top-layer hidden (lane-padded, col 0 real) ----
    logits = jnp.dot(h1f, wfc, preferred_element_type=jnp.float32) + bfc   # (B, 128)
    sig = jax.nn.sigmoid(logits)

    # ---- single unmasked (8,128) output store ----
    hc_out = jnp.concatenate([h0f, c0f, h1f, c1f], axis=1)         # (B, 4H)
    pad = jnp.zeros((out_ref.shape[0] - 2 * B, G), jnp.float32)
    out_ref[...] = jnp.concatenate([hc_out, sig, pad], axis=0)


# ---------------------- one-time parameter packing ---------------------------
def pack_params(params):
    """Permute gates [i,f,g,o]->[i,f,o,g], precompute the embedding gate table,
    and pack everything into one lane-dense (200,128) f32 slab. Done once."""
    perm = np.concatenate(
        [np.arange(0, 2 * H), np.arange(3 * H, 4 * H), np.arange(2 * H, 3 * H)])

    wih0 = params["w_ih_l0"].T[:, perm]                                # (E, 4H)
    b0 = (params["b_ih_l0"] + params["b_hh_l0"])[perm]                 # (4H,)
    gates_table = params["embedding"] @ wih0 + b0                      # (V, 4H)
    gt_pad = jnp.zeros((GT_ROWS, G), jnp.float32).at[:VOCAB_SIZE].set(gates_table)

    whh0 = params["w_hh_l0"].T[:, perm]                                # (H, 4H)
    wih1 = params["w_ih_l1"].T[:, perm]                                # (H, 4H)
    whh1 = params["w_hh_l1"].T[:, perm]                                # (H, 4H)
    b1 = (params["b_ih_l1"] + params["b_hh_l1"])[perm].reshape(1, G)   # (1, 4H)
    b1_blk = jnp.zeros((8, G), jnp.float32).at[0:1].set(b1)

    wfc_pad = jnp.zeros((H, G), jnp.float32).at[:, 0:1].set(params["fc_w"].T)
    bfc_blk = jnp.zeros((8, G), jnp.float32).at[0, 0].set(params["fc_b"][0])

    slab = jnp.concatenate(
        [gt_pad, whh0, wih1, whh1, b1_blk, wfc_pad, bfc_blk], axis=0)
    assert slab.shape == (SLAB_ROWS, G)
    return slab.astype(jnp.float32)


# ------------------------------ JAX wrapper ----------------------------------
@jax.jit
def sentiment_rnn_forward(x_tokens, h0, c0, slab):
    """x_tokens: (B, T) int32; h0, c0: (L, B, H) f32; slab from pack_params().
    Returns (sig_out (B,), (hn, cn))."""
    B, T = x_tokens.shape

    tok_flat = x_tokens.reshape(B * T).astype(jnp.int32)               # batch-major
    hc0 = jnp.concatenate([h0[0], c0[0], h0[1], c0[1]], axis=-1)       # (B, 4H)

    smem = pl.BlockSpec(memory_space=pltpu.MemorySpace.SMEM)
    vmem = pl.BlockSpec(memory_space=pltpu.MemorySpace.VMEM)

    out = pl.pallas_call(
        sentiment_rnn_kernel,
        out_shape=jax.ShapeDtypeStruct((8, G), jnp.float32),
        in_specs=[smem, vmem, vmem],
        out_specs=vmem,
    )(tok_flat, slab, hc0)

    sig = out[B:2 * B, 0]
    hn = jnp.stack([out[0:B, 0:H], out[0:B, 2 * H:3 * H]])
    cn = jnp.stack([out[0:B, H:2 * H], out[0:B, 3 * H:4 * H]])
    return sig, (hn, cn)


# -------------------------- pure-JAX reference --------------------------------
def sentiment_rnn_reference(x_tokens, h0, c0, params):
    B, T = x_tokens.shape
    emb = params["embedding"][x_tokens]  # (B, T, E)

    def lstm_layer(inp, h, c, wih, whh, b_ih, b_hh):
        outs = []
        for t in range(T):
            gates = inp[:, t, :] @ wih.T + b_ih + h @ whh.T + b_hh
            i = jax.nn.sigmoid(gates[:, 0 * H:1 * H])
            f = jax.nn.sigmoid(gates[:, 1 * H:2 * H])
            g = jnp.tanh(gates[:, 2 * H:3 * H])
            o = jax.nn.sigmoid(gates[:, 3 * H:4 * H])
            c = f * c + i * g
            h = o * jnp.tanh(c)
            outs.append(h)
        return jnp.stack(outs, axis=1), h, c

    out0, h0f, c0f = lstm_layer(emb, h0[0], c0[0],
                                params["w_ih_l0"], params["w_hh_l0"],
                                params["b_ih_l0"], params["b_hh_l0"])
    out1, h1f, c1f = lstm_layer(out0, h0[1], c0[1],
                                params["w_ih_l1"], params["w_hh_l1"],
                                params["b_ih_l1"], params["b_hh_l1"])
    lstm_out = out1.reshape(-1, H)                          # (B*T, H)
    logits = lstm_out @ params["fc_w"].T + params["fc_b"]   # (B*T, 1)
    sig = jax.nn.sigmoid(logits).reshape(B, -1)             # (B, T)
    return sig[:, -1], (jnp.stack([h0f, h1f]), jnp.stack([c0f, c1f]))


# --------------------------------- main ---------------------------------------
def make_params(key):
    ks = jax.random.split(key, 12)
    k = 1.0 / jnp.sqrt(HIDDEN_DIM)
    u = lambda kk, shape: jax.random.uniform(kk, shape, jnp.float32, -k, k)
    return {
        "embedding": jax.random.normal(ks[0], (VOCAB_SIZE, EMBEDDING_DIM), jnp.float32),
        "w_ih_l0": u(ks[1], (4 * HIDDEN_DIM, EMBEDDING_DIM)),
        "w_hh_l0": u(ks[2], (4 * HIDDEN_DIM, HIDDEN_DIM)),
        "b_ih_l0": u(ks[3], (4 * HIDDEN_DIM,)),
        "b_hh_l0": u(ks[4], (4 * HIDDEN_DIM,)),
        "w_ih_l1": u(ks[5], (4 * HIDDEN_DIM, HIDDEN_DIM)),
        "w_hh_l1": u(ks[6], (4 * HIDDEN_DIM, HIDDEN_DIM)),
        "b_ih_l1": u(ks[7], (4 * HIDDEN_DIM,)),
        "b_hh_l1": u(ks[8], (4 * HIDDEN_DIM,)),
        "fc_w": u(ks[9], (OUTPUT_SIZE, HIDDEN_DIM)),
        "fc_b": u(ks[10], (OUTPUT_SIZE,)),
    }


if __name__ == "__main__":
    key = jax.random.PRNGKey(0)
    k_param, k_tok = jax.random.split(key)
    params = make_params(k_param)

    # one-time packing (outside the per-call hot path)
    slab = pack_params(params)
    jax.block_until_ready(slab)

    x = jax.random.randint(k_tok, (BATCH, SEQ_LEN), 0, VOCAB_SIZE, dtype=jnp.int32)
    h0 = jnp.zeros((N_LAYERS, BATCH, HIDDEN_DIM), jnp.float32)  # init_hidden()
    c0 = jnp.zeros((N_LAYERS, BATCH, HIDDEN_DIM), jnp.float32)

    sig_out, (hn, cn) = sentiment_rnn_forward(x, h0, c0, slab)
    jax.block_until_ready((sig_out, hn, cn))

    ref_sig, (ref_hn, ref_cn) = sentiment_rnn_reference(x, h0, c0, params)
    assert sig_out.shape == (BATCH,)
    assert hn.shape == (N_LAYERS, BATCH, HIDDEN_DIM)
    assert jnp.allclose(sig_out, ref_sig, atol=1e-5), (sig_out, ref_sig)
    assert jnp.allclose(hn, ref_hn, atol=1e-5)
    assert jnp.allclose(cn, ref_cn, atol=1e-5)

    print("KERNEL_OK")
</pallas_src>

<mosaic_0001>
module attributes {stable_mosaic.version = 11 : i64} {
  func.func @sentiment_rnn_kernel(%arg0: memref<16xi32, #tpu.memory_space<smem>>, %arg1: memref<200x128xf32, #tpu.memory_space<vmem>>, %arg2: memref<2x128xf32, #tpu.memory_space<vmem>>, %arg3: memref<8x128xf32, #tpu.memory_space<vmem>>) attributes {dimension_semantics = [], scalar_prefetch = 0 : i64, scratch_operands = 0 : i64, tpu.core_type = #tpu.core_type<tc>} {
    %c56 = arith.constant 56 : index
    %c0 = arith.constant 0 : index
    %0 = vector.load %arg1[%c56, %c0] : memref<200x128xf32, #tpu.memory_space<vmem>>, vector<32x128xf32>
    %c88 = arith.constant 88 : index
    %c0_0 = arith.constant 0 : index
    %1 = vector.load %arg1[%c88, %c0_0] : memref<200x128xf32, #tpu.memory_space<vmem>>, vector<32x128xf32>
    %c120 = arith.constant 120 : index
    %c0_1 = arith.constant 0 : index
    %2 = vector.load %arg1[%c120, %c0_1] : memref<200x128xf32, #tpu.memory_space<vmem>>, vector<32x128xf32>
    %c152 = arith.constant 152 : index
    %c0_2 = arith.constant 0 : index
    %3 = vector.load %arg1[%c152, %c0_2] : memref<200x128xf32, #tpu.memory_space<vmem>>, vector<1x128xf32>
    %c160 = arith.constant 160 : index
    %c0_3 = arith.constant 0 : index
    %4 = vector.load %arg1[%c160, %c0_3] : memref<200x128xf32, #tpu.memory_space<vmem>>, vector<32x128xf32>
    %c192 = arith.constant 192 : index
    %c0_4 = arith.constant 0 : index
    %5 = vector.load %arg1[%c192, %c0_4] : memref<200x128xf32, #tpu.memory_space<vmem>>, vector<1x128xf32>
    %c0_5 = arith.constant 0 : index
    %c0_6 = arith.constant 0 : index
    %6 = vector.load %arg2[%c0_5, %c0_6] : memref<2x128xf32, #tpu.memory_space<vmem>>, vector<2x128xf32>
    %7 = vector.extract_strided_slice %6 {offsets = [0, 0], sizes = [2, 32], strides = [1, 1]} : vector<2x128xf32> to vector<2x32xf32>
    %8 = vector.extract_strided_slice %6 {offsets = [0, 32], sizes = [2, 32], strides = [1, 1]} : vector<2x128xf32> to vector<2x32xf32>
    %9 = vector.extract_strided_slice %6 {offsets = [0, 64], sizes = [2, 32], strides = [1, 1]} : vector<2x128xf32> to vector<2x32xf32>
    %10 = vector.extract_strided_slice %6 {offsets = [0, 96], sizes = [2, 32], strides = [1, 1]} : vector<2x128xf32> to vector<2x32xf32>
    %c0_7 = arith.constant 0 : index
    %11 = memref.load %arg0[%c0_7] : memref<16xi32, #tpu.memory_space<smem>>
    %12 = arith.index_cast %11 : i32 to index
    %c0_8 = arith.constant 0 : index
    %13 = vector.load %arg1[%12, %c0_8] : memref<200x128xf32, #tpu.memory_space<vmem>>, vector<1x128xf32>
    %c8 = arith.constant 8 : index
    %14 = memref.load %arg0[%c8] : memref<16xi32, #tpu.memory_space<smem>>
    %15 = arith.index_cast %14 : i32 to index
    %c0_9 = arith.constant 0 : index
    %16 = vector.load %arg1[%15, %c0_9] : memref<200x128xf32, #tpu.memory_space<vmem>>, vector<1x128xf32>
    %17 = tpu.concatenate %13, %16 in 0 : vector<1x128xf32>, vector<1x128xf32> -> vector<2x128xf32>
    %c1 = arith.constant 1 : index
    %18 = memref.load %arg0[%c1] : memref<16xi32, #tpu.memory_space<smem>>
    %19 = arith.index_cast %18 : i32 to index
    %c0_10 = arith.constant 0 : index
    %20 = vector.load %arg1[%19, %c0_10] : memref<200x128xf32, #tpu.memory_space<vmem>>, vector<1x128xf32>
    %c9 = arith.constant 9 : index
    %21 = memref.load %arg0[%c9] : memref<16xi32, #tpu.memory_space<smem>>
    %22 = arith.index_cast %21 : i32 to index
    %c0_11 = arith.constant 0 : index
    %23 = vector.load %arg1[%22, %c0_11] : memref<200x128xf32, #tpu.memory_space<vmem>>, vector<1x128xf32>
    %24 = tpu.concatenate %20, %23 in 0 : vector<1x128xf32>, vector<1x128xf32> -> vector<2x128xf32>
    %c2 = arith.constant 2 : index
    %25 = memref.load %arg0[%c2] : memref<16xi32, #tpu.memory_space<smem>>
    %26 = arith.index_cast %25 : i32 to index
    %c0_12 = arith.constant 0 : index
    %27 = vector.load %arg1[%26, %c0_12] : memref<200x128xf32, #tpu.memory_space<vmem>>, vector<1x128xf32>
    %c10 = arith.constant 10 : index
    %28 = memref.load %arg0[%c10] : memref<16xi32, #tpu.memory_space<smem>>
    %29 = arith.index_cast %28 : i32 to index
    %c0_13 = arith.constant 0 : index
    %30 = vector.load %arg1[%29, %c0_13] : memref<200x128xf32, #tpu.memory_space<vmem>>, vector<1x128xf32>
    %31 = tpu.concatenate %27, %30 in 0 : vector<1x128xf32>, vector<1x128xf32> -> vector<2x128xf32>
    %c3 = arith.constant 3 : index
    %32 = memref.load %arg0[%c3] : memref<16xi32, #tpu.memory_space<smem>>
    %33 = arith.index_cast %32 : i32 to index
    %c0_14 = arith.constant 0 : index
    %34 = vector.load %arg1[%33, %c0_14] : memref<200x128xf32, #tpu.memory_space<vmem>>, vector<1x128xf32>
    %c11 = arith.constant 11 : index
    %35 = memref.load %arg0[%c11] : memref<16xi32, #tpu.memory_space<smem>>
    %36 = arith.index_cast %35 : i32 to index
    %c0_15 = arith.constant 0 : index
    %37 = vector.load %arg1[%36, %c0_15] : memref<200x128xf32, #tpu.memory_space<vmem>>, vector<1x128xf32>
    %38 = tpu.concatenate %34, %37 in 0 : vector<1x128xf32>, vector<1x128xf32> -> vector<2x128xf32>
    %c4 = arith.constant 4 : index
    %39 = memref.load %arg0[%c4] : memref<16xi32, #tpu.memory_space<smem>>
    %40 = arith.index_cast %39 : i32 to index
    %c0_16 = arith.constant 0 : index
    %41 = vector.load %arg1[%40, %c0_16] : memref<200x128xf32, #tpu.memory_space<vmem>>, vector<1x128xf32>
    %c12 = arith.constant 12 : index
    %42 = memref.load %arg0[%c12] : memref<16xi32, #tpu.memory_space<smem>>
    %43 = arith.index_cast %42 : i32 to index
    %c0_17 = arith.constant 0 : index
    %44 = vector.load %arg1[%43, %c0_17] : memref<200x128xf32, #tpu.memory_space<vmem>>, vector<1x128xf32>
    %45 = tpu.concatenate %41, %44 in 0 : vector<1x128xf32>, vector<1x128xf32> -> vector<2x128xf32>
    %c5 = arith.constant 5 : index
    %46 = memref.load %arg0[%c5] : memref<16xi32, #tpu.memory_space<smem>>
    %47 = arith.index_cast %46 : i32 to index
    %c0_18 = arith.constant 0 : index
    %48 = vector.load %arg1[%47, %c0_18] : memref<200x128xf32, #tpu.memory_space<vmem>>, vector<1x128xf32>
    %c13 = arith.constant 13 : index
    %49 = memref.load %arg0[%c13] : memref<16xi32, #tpu.memory_space<smem>>
    %50 = arith.index_cast %49 : i32 to index
    %c0_19 = arith.constant 0 : index
    %51 = vector.load %arg1[%50, %c0_19] : memref<200x128xf32, #tpu.memory_space<vmem>>, vector<1x128xf32>
    %52 = tpu.concatenate %48, %51 in 0 : vector<1x128xf32>, vector<1x128xf32> -> vector<2x128xf32>
    %c6 = arith.constant 6 : index
    %53 = memref.load %arg0[%c6] : memref<16xi32, #tpu.memory_space<smem>>
    %54 = arith.index_cast %53 : i32 to index
    %c0_20 = arith.constant 0 : index
    %55 = vector.load %arg1[%54, %c0_20] : memref<200x128xf32, #tpu.memory_space<vmem>>, vector<1x128xf32>
    %c14 = arith.constant 14 : index
    %56 = memref.load %arg0[%c14] : memref<16xi32, #tpu.memory_space<smem>>
    %57 = arith.index_cast %56 : i32 to index
    %c0_21 = arith.constant 0 : index
    %58 = vector.load %arg1[%57, %c0_21] : memref<200x128xf32, #tpu.memory_space<vmem>>, vector<1x128xf32>
    %59 = tpu.concatenate %55, %58 in 0 : vector<1x128xf32>, vector<1x128xf32> -> vector<2x128xf32>
    %c7 = arith.constant 7 : index
    %60 = memref.load %arg0[%c7] : memref<16xi32, #tpu.memory_space<smem>>
    %61 = arith.index_cast %60 : i32 to index
    %c0_22 = arith.constant 0 : index
    %62 = vector.load %arg1[%61, %c0_22] : memref<200x128xf32, #tpu.memory_space<vmem>>, vector<1x128xf32>
    %c15 = arith.constant 15 : index
    %63 = memref.load %arg0[%c15] : memref<16xi32, #tpu.memory_space<smem>>
    %64 = arith.index_cast %63 : i32 to index
    %c0_23 = arith.constant 0 : index
    %65 = vector.load %arg1[%64, %c0_23] : memref<200x128xf32, #tpu.memory_space<vmem>>, vector<1x128xf32>
    %66 = tpu.concatenate %62, %65 in 0 : vector<1x128xf32>, vector<1x128xf32> -> vector<2x128xf32>
    %cst = arith.constant dense<0.000000e+00> : vector<2x128xf32>
    %67 = tpu.matmul %7, %0, %cst {dimension_numbers = #tpu.dot_dimension_numbers<[1], [0], [0], [1], [0, 0, 1, 1], [], []>} : vector<2x32xf32>, vector<32x128xf32>, vector<2x128xf32> -> vector<2x128xf32>
    %68 = arith.addf %17, %67 : vector<2x128xf32>
    %69 = vector.extract_strided_slice %68 {offsets = [0, 0], sizes = [2, 96], strides = [1, 1]} : vector<2x128xf32> to vector<2x96xf32>
    %70 = arith.negf %69 : vector<2x96xf32>
    %71 = math.exp %70 : vector<2x96xf32>
    %cst_24 = arith.constant 1.000000e+00 : f32
    %72 = vector.broadcast %cst_24 : f32 to vector<2x96xf32>
    %73 = arith.addf %72, %71 : vector<2x96xf32>
    %74 = arith.divf %72, %73 : vector<2x96xf32>
    %75 = vector.extract_strided_slice %68 {offsets = [0, 96], sizes = [2, 32], strides = [1, 1]} : vector<2x128xf32> to vector<2x32xf32>
    %76 = math.tanh %75 : vector<2x32xf32>
    %77 = vector.extract_strided_slice %74 {offsets = [0, 0], sizes = [2, 32], strides = [1, 1]} : vector<2x96xf32> to vector<2x32xf32>
    %78 = vector.extract_strided_slice %74 {offsets = [0, 32], sizes = [2, 32], strides = [1, 1]} : vector<2x96xf32> to vector<2x32xf32>
    %79 = vector.extract_strided_slice %74 {offsets = [0, 64], sizes = [2, 32], strides = [1, 1]} : vector<2x96xf32> to vector<2x32xf32>
    %80 = arith.mulf %78, %8 : vector<2x32xf32>
    %81 = arith.mulf %77, %76 : vector<2x32xf32>
    %82 = arith.addf %80, %81 : vector<2x32xf32>
    %83 = math.tanh %82 : vector<2x32xf32>
    %84 = arith.mulf %79, %83 : vector<2x32xf32>
    %cst_25 = arith.constant dense<0.000000e+00> : vector<2x128xf32>
    %85 = tpu.matmul %84, %0, %cst_25 {dimension_numbers = #tpu.dot_dimension_numbers<[1], [0], [0], [1], [0, 0, 1, 1], [], []>} : vector<2x32xf32>, vector<32x128xf32>, vector<2x128xf32> -> vector<2x128xf32>
    %86 = arith.addf %24, %85 : vector<2x128xf32>
    %87 = vector.extract_strided_slice %86 {offsets = [0, 0], sizes = [2, 96], strides = [1, 1]} : vector<2x128xf32> to vector<2x96xf32>
    %88 = arith.negf %87 : vector<2x96xf32>
    %89 = math.exp %88 : vector<2x96xf32>
    %cst_26 = arith.constant 1.000000e+00 : f32
    %90 = vector.broadcast %cst_26 : f32 to vector<2x96xf32>
    %91 = arith.addf %90, %89 : vector<2x96xf32>
    %92 = arith.divf %90, %91 : vector<2x96xf32>
    %93 = vector.extract_strided_slice %86 {offsets = [0, 96], sizes = [2, 32], strides = [1, 1]} : vector<2x128xf32> to vector<2x32xf32>
    %94 = math.tanh %93 : vector<2x32xf32>
    %95 = vector.extract_strided_slice %92 {offsets = [0, 0], sizes = [2, 32], strides = [1, 1]} : vector<2x96xf32> to vector<2x32xf32>
    %96 = vector.extract_strided_slice %92 {offsets = [0, 32], sizes = [2, 32], strides = [1, 1]} : vector<2x96xf32> to vector<2x32xf32>
    %97 = vector.extract_strided_slice %92 {offsets = [0, 64], sizes = [2, 32], strides = [1, 1]} : vector<2x96xf32> to vector<2x32xf32>
    %98 = arith.mulf %96, %82 : vector<2x32xf32>
    %99 = arith.mulf %95, %94 : vector<2x32xf32>
    %100 = arith.addf %98, %99 : vector<2x32xf32>
    %101 = math.tanh %100 : vector<2x32xf32>
    %102 = arith.mulf %97, %101 : vector<2x32xf32>
    %cst_27 = arith.constant dense<0.000000e+00> : vector<2x128xf32>
    %103 = tpu.matmul %102, %0, %cst_27 {dimension_numbers = #tpu.dot_dimension_numbers<[1], [0], [0], [1], [0, 0, 1, 1], [], []>} : vector<2x32xf32>, vector<32x128xf32>, vector<2x128xf32> -> vector<2x128xf32>
    %104 = arith.addf %31, %103 : vector<2x128xf32>
    %105 = vector.extract_strided_slice %104 {offsets = [0, 0], sizes = [2, 96], strides = [1, 1]} : vector<2x128xf32> to vector<2x96xf32>
    %106 = arith.negf %105 : vector<2x96xf32>
    %107 = math.exp %106 : vector<2x96xf32>
    %cst_28 = arith.constant 1.000000e+00 : f32
    %108 = vector.broadcast %cst_28 : f32 to vector<2x96xf32>
    %109 = arith.addf %108, %107 : vector<2x96xf32>
    %110 = arith.divf %108, %109 : vector<2x96xf32>
    %111 = vector.extract_strided_slice %104 {offsets = [0, 96], sizes = [2, 32], strides = [1, 1]} : vector<2x128xf32> to vector<2x32xf32>
    %112 = math.tanh %111 : vector<2x32xf32>
    %113 = vector.extract_strided_slice %110 {offsets = [0, 0], sizes = [2, 32], strides = [1, 1]} : vector<2x96xf32> to vector<2x32xf32>
    %114 = vector.extract_strided_slice %110 {offsets = [0, 32], sizes = [2, 32], strides = [1, 1]} : vector<2x96xf32> to vector<2x32xf32>
    %115 = vector.extract_strided_slice %110 {offsets = [0, 64], sizes = [2, 32], strides = [1, 1]} : vector<2x96xf32> to vector<2x32xf32>
    %116 = arith.mulf %114, %100 : vector<2x32xf32>
    %117 = arith.mulf %113, %112 : vector<2x32xf32>
    %118 = arith.addf %116, %117 : vector<2x32xf32>
    %119 = math.tanh %118 : vector<2x32xf32>
    %120 = arith.mulf %115, %119 : vector<2x32xf32>
    %cst_29 = arith.constant dense<0.000000e+00> : vector<2x128xf32>
    %121 = tpu.matmul %120, %0, %cst_29 {dimension_numbers = #tpu.dot_dimension_numbers<[1], [0], [0], [1], [0, 0, 1, 1], [], []>} : vector<2x32xf32>, vector<32x128xf32>, vector<2x128xf32> -> vector<2x128xf32>
    %122 = arith.addf %38, %121 : vector<2x128xf32>
    %123 = vector.extract_strided_slice %122 {offsets = [0, 0], sizes = [2, 96], strides = [1, 1]} : vector<2x128xf32> to vector<2x96xf32>
    %124 = arith.negf %123 : vector<2x96xf32>
    %125 = math.exp %124 : vector<2x96xf32>
    %cst_30 = arith.constant 1.000000e+00 : f32
    %126 = vector.broadcast %cst_30 : f32 to vector<2x96xf32>
    %127 = arith.addf %126, %125 : vector<2x96xf32>
    %128 = arith.divf %126, %127 : vector<2x96xf32>
    %129 = vector.extract_strided_slice %122 {offsets = [0, 96], sizes = [2, 32], strides = [1, 1]} : vector<2x128xf32> to vector<2x32xf32>
    %130 = math.tanh %129 : vector<2x32xf32>
    %131 = vector.extract_strided_slice %128 {offsets = [0, 0], sizes = [2, 32], strides = [1, 1]} : vector<2x96xf32> to vector<2x32xf32>
    %132 = vector.extract_strided_slice %128 {offsets = [0, 32], sizes = [2, 32], strides = [1, 1]} : vector<2x96xf32> to vector<2x32xf32>
    %133 = vector.extract_strided_slice %128 {offsets = [0, 64], sizes = [2, 32], strides = [1, 1]} : vector<2x96xf32> to vector<2x32xf32>
    %134 = arith.mulf %132, %118 : vector<2x32xf32>
    %135 = arith.mulf %131, %130 : vector<2x32xf32>
    %136 = arith.addf %134, %135 : vector<2x32xf32>
    %137 = math.tanh %136 : vector<2x32xf32>
    %138 = arith.mulf %133, %137 : vector<2x32xf32>
    %cst_31 = arith.constant dense<0.000000e+00> : vector<2x128xf32>
    %139 = tpu.matmul %138, %0, %cst_31 {dimension_numbers = #tpu.dot_dimension_numbers<[1], [0], [0], [1], [0, 0, 1, 1], [], []>} : vector<2x32xf32>, vector<32x128xf32>, vector<2x128xf32> -> vector<2x128xf32>
    %140 = arith.addf %45, %139 : vector<2x128xf32>
    %141 = vector.extract_strided_slice %140 {offsets = [0, 0], sizes = [2, 96], strides = [1, 1]} : vector<2x128xf32> to vector<2x96xf32>
    %142 = arith.negf %141 : vector<2x96xf32>
    %143 = math.exp %142 : vector<2x96xf32>
    %cst_32 = arith.constant 1.000000e+00 : f32
    %144 = vector.broadcast %cst_32 : f32 to vector<2x96xf32>
    %145 = arith.addf %144, %143 : vector<2x96xf32>
    %146 = arith.divf %144, %145 : vector<2x96xf32>
    %147 = vector.extract_strided_slice %140 {offsets = [0, 96], sizes = [2, 32], strides = [1, 1]} : vector<2x128xf32> to vector<2x32xf32>
    %148 = math.tanh %147 : vector<2x32xf32>
    %149 = vector.extract_strided_slice %146 {offsets = [0, 0], sizes = [2, 32], strides = [1, 1]} : vector<2x96xf32> to vector<2x32xf32>
    %150 = vector.extract_strided_slice %146 {offsets = [0, 32], sizes = [2, 32], strides = [1, 1]} : vector<2x96xf32> to vector<2x32xf32>
    %151 = vector.extract_strided_slice %146 {offsets = [0, 64], sizes = [2, 32], strides = [1, 1]} : vector<2x96xf32> to vector<2x32xf32>
    %152 = arith.mulf %150, %136 : vector<2x32xf32>
    %153 = arith.mulf %149, %148 : vector<2x32xf32>
    %154 = arith.addf %152, %153 : vector<2x32xf32>
    %155 = math.tanh %154 : vector<2x32xf32>
    %156 = arith.mulf %151, %155 : vector<2x32xf32>
    %cst_33 = arith.constant dense<0.000000e+00> : vector<2x128xf32>
    %157 = tpu.matmul %156, %0, %cst_33 {dimension_numbers = #tpu.dot_dimension_numbers<[1], [0], [0], [1], [0, 0, 1, 1], [], []>} : vector<2x32xf32>, vector<32x128xf32>, vector<2x128xf32> -> vector<2x128xf32>
    %158 = arith.addf %52, %157 : vector<2x128xf32>
    %159 = vector.extract_strided_slice %158 {offsets = [0, 0], sizes = [2, 96], strides = [1, 1]} : vector<2x128xf32> to vector<2x96xf32>
    %160 = arith.negf %159 : vector<2x96xf32>
    %161 = math.exp %160 : vector<2x96xf32>
    %cst_34 = arith.constant 1.000000e+00 : f32
    %162 = vector.broadcast %cst_34 : f32 to vector<2x96xf32>
    %163 = arith.addf %162, %161 : vector<2x96xf32>
    %164 = arith.divf %162, %163 : vector<2x96xf32>
    %165 = vector.extract_strided_slice %158 {offsets = [0, 96], sizes = [2, 32], strides = [1, 1]} : vector<2x128xf32> to vector<2x32xf32>
    %166 = math.tanh %165 : vector<2x32xf32>
    %167 = vector.extract_strided_slice %164 {offsets = [0, 0], sizes = [2, 32], strides = [1, 1]} : vector<2x96xf32> to vector<2x32xf32>
    %168 = vector.extract_strided_slice %164 {offsets = [0, 32], sizes = [2, 32], strides = [1, 1]} : vector<2x96xf32> to vector<2x32xf32>
    %169 = vector.extract_strided_slice %164 {offsets = [0, 64], sizes = [2, 32], strides = [1, 1]} : vector<2x96xf32> to vector<2x32xf32>
    %170 = arith.mulf %168, %154 : vector<2x32xf32>
    %171 = arith.mulf %167, %166 : vector<2x32xf32>
    %172 = arith.addf %170, %171 : vector<2x32xf32>
    %173 = math.tanh %172 : vector<2x32xf32>
    %174 = arith.mulf %169, %173 : vector<2x32xf32>
    %cst_35 = arith.constant dense<0.000000e+00> : vector<2x128xf32>
    %175 = tpu.matmul %174, %0, %cst_35 {dimension_numbers = #tpu.dot_dimension_numbers<[1], [0], [0], [1], [0, 0, 1, 1], [], []>} : vector<2x32xf32>, vector<32x128xf32>, vector<2x128xf32> -> vector<2x128xf32>
    %176 = arith.addf %59, %175 : vector<2x128xf32>
    %177 = vector.extract_strided_slice %176 {offsets = [0, 0], sizes = [2, 96], strides = [1, 1]} : vector<2x128xf32> to vector<2x96xf32>
    %178 = arith.negf %177 : vector<2x96xf32>
    %179 = math.exp %178 : vector<2x96xf32>
    %cst_36 = arith.constant 1.000000e+00 : f32
    %180 = vector.broadcast %cst_36 : f32 to vector<2x96xf32>
    %181 = arith.addf %180, %179 : vector<2x96xf32>
    %182 = arith.divf %180, %181 : vector<2x96xf32>
    %183 = vector.extract_strided_slice %176 {offsets = [0, 96], sizes = [2, 32], strides = [1, 1]} : vector<2x128xf32> to vector<2x32xf32>
    %184 = math.tanh %183 : vector<2x32xf32>
    %185 = vector.extract_strided_slice %182 {offsets = [0, 0], sizes = [2, 32], strides = [1, 1]} : vector<2x96xf32> to vector<2x32xf32>
    %186 = vector.extract_strided_slice %182 {offsets = [0, 32], sizes = [2, 32], strides = [1, 1]} : vector<2x96xf32> to vector<2x32xf32>
    %187 = vector.extract_strided_slice %182 {offsets = [0, 64], sizes = [2, 32], strides = [1, 1]} : vector<2x96xf32> to vector<2x32xf32>
    %188 = arith.mulf %186, %172 : vector<2x32xf32>
    %189 = arith.mulf %185, %184 : vector<2x32xf32>
    %190 = arith.addf %188, %189 : vector<2x32xf32>
    %191 = math.tanh %190 : vector<2x32xf32>
    %192 = arith.mulf %187, %191 : vector<2x32xf32>
    %cst_37 = arith.constant dense<0.000000e+00> : vector<2x128xf32>
    %193 = tpu.matmul %192, %0, %cst_37 {dimension_numbers = #tpu.dot_dimension_numbers<[1], [0], [0], [1], [0, 0, 1, 1], [], []>} : vector<2x32xf32>, vector<32x128xf32>, vector<2x128xf32> -> vector<2x128xf32>
    %194 = arith.addf %66, %193 : vector<2x128xf32>
    %195 = vector.extract_strided_slice %194 {offsets = [0, 0], sizes = [2, 96], strides = [1, 1]} : vector<2x128xf32> to vector<2x96xf32>
    %196 = arith.negf %195 : vector<2x96xf32>
    %197 = math.exp %196 : vector<2x96xf32>
    %cst_38 = arith.constant 1.000000e+00 : f32
    %198 = vector.broadcast %cst_38 : f32 to vector<2x96xf32>
    %199 = arith.addf %198, %197 : vector<2x96xf32>
    %200 = arith.divf %198, %199 : vector<2x96xf32>
    %201 = vector.extract_strided_slice %194 {offsets = [0, 96], sizes = [2, 32], strides = [1, 1]} : vector<2x128xf32> to vector<2x32xf32>
    %202 = math.tanh %201 : vector<2x32xf32>
    %203 = vector.extract_strided_slice %200 {offsets = [0, 0], sizes = [2, 32], strides = [1, 1]} : vector<2x96xf32> to vector<2x32xf32>
    %204 = vector.extract_strided_slice %200 {offsets = [0, 32], sizes = [2, 32], strides = [1, 1]} : vector<2x96xf32> to vector<2x32xf32>
    %205 = vector.extract_strided_slice %200 {offsets = [0, 64], sizes = [2, 32], strides = [1, 1]} : vector<2x96xf32> to vector<2x32xf32>
    %206 = arith.mulf %204, %190 : vector<2x32xf32>
    %207 = arith.mulf %203, %202 : vector<2x32xf32>
    %208 = arith.addf %206, %207 : vector<2x32xf32>
    %209 = math.tanh %208 : vector<2x32xf32>
    %210 = arith.mulf %205, %209 : vector<2x32xf32>
    %211 = tpu.concatenate %84, %102, %120, %138, %156, %174, %192, %210 in 0 : vector<2x32xf32>, vector<2x32xf32>, vector<2x32xf32>, vector<2x32xf32>, vector<2x32xf32>, vector<2x32xf32>, vector<2x32xf32>, vector<2x32xf32> -> vector<16x32xf32>
    %cst_39 = arith.constant dense<0.000000e+00> : vector<16x128xf32>
    %212 = tpu.matmul %211, %1, %cst_39 {dimension_numbers = #tpu.dot_dimension_numbers<[1], [0], [0], [1], [0, 0, 1, 1], [], []>} : vector<16x32xf32>, vector<32x128xf32>, vector<16x128xf32> -> vector<16x128xf32>
    %213 = vector.broadcast %3 : vector<1x128xf32> to vector<16x128xf32>
    %214 = arith.addf %212, %213 : vector<16x128xf32>
    %215 = vector.extract_strided_slice %214 {offsets = [0, 0], sizes = [2, 128], strides = [1, 1]} : vector<16x128xf32> to vector<2x128xf32>
    %cst_40 = arith.constant dense<0.000000e+00> : vector<2x128xf32>
    %216 = tpu.matmul %9, %2, %cst_40 {dimension_numbers = #tpu.dot_dimension_numbers<[1], [0], [0], [1], [0, 0, 1, 1], [], []>} : vector<2x32xf32>, vector<32x128xf32>, vector<2x128xf32> -> vector<2x128xf32>
    %217 = arith.addf %215, %216 : vector<2x128xf32>
    %218 = vector.extract_strided_slice %217 {offsets = [0, 0], sizes = [2, 96], strides = [1, 1]} : vector<2x128xf32> to vector<2x96xf32>
    %219 = arith.negf %218 : vector<2x96xf32>
    %220 = math.exp %219 : vector<2x96xf32>
    %cst_41 = arith.constant 1.000000e+00 : f32
    %221 = vector.broadcast %cst_41 : f32 to vector<2x96xf32>
    %222 = arith.addf %221, %220 : vector<2x96xf32>
    %223 = arith.divf %221, %222 : vector<2x96xf32>
    %224 = vector.extract_strided_slice %217 {offsets = [0, 96], sizes = [2, 32], strides = [1, 1]} : vector<2x128xf32> to vector<2x32xf32>
    %225 = math.tanh %224 : vector<2x32xf32>
    %226 = vector.extract_strided_slice %223 {offsets = [0, 0], sizes = [2, 32], strides = [1, 1]} : vector<2x96xf32> to vector<2x32xf32>
    %227 = vector.extract_strided_slice %223 {offsets = [0, 32], sizes = [2, 32], strides = [1, 1]} : vector<2x96xf32> to vector<2x32xf32>
    %228 = vector.extract_strided_slice %223 {offsets = [0, 64], sizes = [2, 32], strides = [1, 1]} : vector<2x96xf32> to vector<2x32xf32>
    %229 = arith.mulf %227, %10 : vector<2x32xf32>
    %230 = arith.mulf %226, %225 : vector<2x32xf32>
    %231 = arith.addf %229, %230 : vector<2x32xf32>
    %232 = math.tanh %231 : vector<2x32xf32>
    %233 = arith.mulf %228, %232 : vector<2x32xf32>
    %234 = vector.extract_strided_slice %214 {offsets = [2, 0], sizes = [2, 128], strides = [1, 1]} : vector<16x128xf32> to vector<2x128xf32>
    %cst_42 = arith.constant dense<0.000000e+00> : vector<2x128xf32>
    %235 = tpu.matmul %233, %2, %cst_42 {dimension_numbers = #tpu.dot_dimension_numbers<[1], [0], [0], [1], [0, 0, 1, 1], [], []>} : vector<2x32xf32>, vector<32x128xf32>, vector<2x128xf32> -> vector<2x128xf32>
    %236 = arith.addf %234, %235 : vector<2x128xf32>
    %237 = vector.extract_strided_slice %236 {offsets = [0, 0], sizes = [2, 96], strides = [1, 1]} : vector<2x128xf32> to vector<2x96xf32>
    %238 = arith.negf %237 : vector<2x96xf32>
    %239 = math.exp %238 : vector<2x96xf32>
    %cst_43 = arith.constant 1.000000e+00 : f32
    %240 = vector.broadcast %cst_43 : f32 to vector<2x96xf32>
    %241 = arith.addf %240, %239 : vector<2x96xf32>
    %242 = arith.divf %240, %241 : vector<2x96xf32>
    %243 = vector.extract_strided_slice %236 {offsets = [0, 96], sizes = [2, 32], strides = [1, 1]} : vector<2x128xf32> to vector<2x32xf32>
    %244 = math.tanh %243 : vector<2x32xf32>
    %245 = vector.extract_strided_slice %242 {offsets = [0, 0], sizes = [2, 32], strides = [1, 1]} : vector<2x96xf32> to vector<2x32xf32>
    %246 = vector.extract_strided_slice %242 {offsets = [0, 32], sizes = [2, 32], strides = [1, 1]} : vector<2x96xf32> to vector<2x32xf32>
    %247 = vector.extract_strided_slice %242 {offsets = [0, 64], sizes = [2, 32], strides = [1, 1]} : vector<2x96xf32> to vector<2x32xf32>
    %248 = arith.mulf %246, %231 : vector<2x32xf32>
    %249 = arith.mulf %245, %244 : vector<2x32xf32>
    %250 = arith.addf %248, %249 : vector<2x32xf32>
    %251 = math.tanh %250 : vector<2x32xf32>
    %252 = arith.mulf %247, %251 : vector<2x32xf32>
    %253 = vector.extract_strided_slice %214 {offsets = [4, 0], sizes = [2, 128], strides = [1, 1]} : vector<16x128xf32> to vector<2x128xf32>
    %cst_44 = arith.constant dense<0.000000e+00> : vector<2x128xf32>
    %254 = tpu.matmul %252, %2, %cst_44 {dimension_numbers = #tpu.dot_dimension_numbers<[1], [0], [0], [1], [0, 0, 1, 1], [], []>} : vector<2x32xf32>, vector<32x128xf32>, vector<2x128xf32> -> vector<2x128xf32>
    %255 = arith.addf %253, %254 : vector<2x128xf32>
    %256 = vector.extract_strided_slice %255 {offsets = [0, 0], sizes = [2, 96], strides = [1, 1]} : vector<2x128xf32> to vector<2x96xf32>
    %257 = arith.negf %256 : vector<2x96xf32>
    %258 = math.exp %257 : vector<2x96xf32>
    %cst_45 = arith.constant 1.000000e+00 : f32
    %259 = vector.broadcast %cst_45 : f32 to vector<2x96xf32>
    %260 = arith.addf %259, %258 : vector<2x96xf32>
    %261 = arith.divf %259, %260 : vector<2x96xf32>
    %262 = vector.extract_strided_slice %255 {offsets = [0, 96], sizes = [2, 32], strides = [1, 1]} : vector<2x128xf32> to vector<2x32xf32>
    %263 = math.tanh %262 : vector<2x32xf32>
    %264 = vector.extract_strided_slice %261 {offsets = [0, 0], sizes = [2, 32], strides = [1, 1]} : vector<2x96xf32> to vector<2x32xf32>
    %265 = vector.extract_strided_slice %261 {offsets = [0, 32], sizes = [2, 32], strides = [1, 1]} : vector<2x96xf32> to vector<2x32xf32>
    %266 = vector.extract_strided_slice %261 {offsets = [0, 64], sizes = [2, 32], strides = [1, 1]} : vector<2x96xf32> to vector<2x32xf32>
    %267 = arith.mulf %265, %250 : vector<2x32xf32>
    %268 = arith.mulf %264, %263 : vector<2x32xf32>
    %269 = arith.addf %267, %268 : vector<2x32xf32>
    %270 = math.tanh %269 : vector<2x32xf32>
    %271 = arith.mulf %266, %270 : vector<2x32xf32>
    %272 = vector.extract_strided_slice %214 {offsets = [6, 0], sizes = [2, 128], strides = [1, 1]} : vector<16x128xf32> to vector<2x128xf32>
    %cst_46 = arith.constant dense<0.000000e+00> : vector<2x128xf32>
    %273 = tpu.matmul %271, %2, %cst_46 {dimension_numbers = #tpu.dot_dimension_numbers<[1], [0], [0], [1], [0, 0, 1, 1], [], []>} : vector<2x32xf32>, vector<32x128xf32>, vector<2x128xf32> -> vector<2x128xf32>
    %274 = arith.addf %272, %273 : vector<2x128xf32>
    %275 = vector.extract_strided_slice %274 {offsets = [0, 0], sizes = [2, 96], strides = [1, 1]} : vector<2x128xf32> to vector<2x96xf32>
    %276 = arith.negf %275 : vector<2x96xf32>
    %277 = math.exp %276 : vector<2x96xf32>
    %cst_47 = arith.constant 1.000000e+00 : f32
    %278 = vector.broadcast %cst_47 : f32 to vector<2x96xf32>
    %279 = arith.addf %278, %277 : vector<2x96xf32>
    %280 = arith.divf %278, %279 : vector<2x96xf32>
    %281 = vector.extract_strided_slice %274 {offsets = [0, 96], sizes = [2, 32], strides = [1, 1]} : vector<2x128xf32> to vector<2x32xf32>
    %282 = math.tanh %281 : vector<2x32xf32>
    %283 = vector.extract_strided_slice %280 {offsets = [0, 0], sizes = [2, 32], strides = [1, 1]} : vector<2x96xf32> to vector<2x32xf32>
    %284 = vector.extract_strided_slice %280 {offsets = [0, 32], sizes = [2, 32], strides = [1, 1]} : vector<2x96xf32> to vector<2x32xf32>
    %285 = vector.extract_strided_slice %280 {offsets = [0, 64], sizes = [2, 32], strides = [1, 1]} : vector<2x96xf32> to vector<2x32xf32>
    %286 = arith.mulf %284, %269 : vector<2x32xf32>
    %287 = arith.mulf %283, %282 : vector<2x32xf32>
    %288 = arith.addf %286, %287 : vector<2x32xf32>
    %289 = math.tanh %288 : vector<2x32xf32>
    %290 = arith.mulf %285, %289 : vector<2x32xf32>
    %291 = vector.extract_strided_slice %214 {offsets = [8, 0], sizes = [2, 128], strides = [1, 1]} : vector<16x128xf32> to vector<2x128xf32>
    %cst_48 = arith.constant dense<0.000000e+00> : vector<2x128xf32>
    %292 = tpu.matmul %290, %2, %cst_48 {dimension_numbers = #tpu.dot_dimension_numbers<[1], [0], [0], [1], [0, 0, 1, 1], [], []>} : vector<2x32xf32>, vector<32x128xf32>, vector<2x128xf32> -> vector<2x128xf32>
    %293 = arith.addf %291, %292 : vector<2x128xf32>
    %294 = vector.extract_strided_slice %293 {offsets = [0, 0], sizes = [2, 96], strides = [1, 1]} : vector<2x128xf32> to vector<2x96xf32>
    %295 = arith.negf %294 : vector<2x96xf32>
    %296 = math.exp %295 : vector<2x96xf32>
    %cst_49 = arith.constant 1.000000e+00 : f32
    %297 = vector.broadcast %cst_49 : f32 to vector<2x96xf32>
    %298 = arith.addf %297, %296 : vector<2x96xf32>
    %299 = arith.divf %297, %298 : vector<2x96xf32>
    %300 = vector.extract_strided_slice %293 {offsets = [0, 96], sizes = [2, 32], strides = [1, 1]} : vector<2x128xf32> to vector<2x32xf32>
    %301 = math.tanh %300 : vector<2x32xf32>
    %302 = vector.extract_strided_slice %299 {offsets = [0, 0], sizes = [2, 32], strides = [1, 1]} : vector<2x96xf32> to vector<2x32xf32>
    %303 = vector.extract_strided_slice %299 {offsets = [0, 32], sizes = [2, 32], strides = [1, 1]} : vector<2x96xf32> to vector<2x32xf32>
    %304 = vector.extract_strided_slice %299 {offsets = [0, 64], sizes = [2, 32], strides = [1, 1]} : vector<2x96xf32> to vector<2x32xf32>
    %305 = arith.mulf %303, %288 : vector<2x32xf32>
    %306 = arith.mulf %302, %301 : vector<2x32xf32>
    %307 = arith.addf %305, %306 : vector<2x32xf32>
    %308 = math.tanh %307 : vector<2x32xf32>
    %309 = arith.mulf %304, %308 : vector<2x32xf32>
    %310 = vector.extract_strided_slice %214 {offsets = [10, 0], sizes = [2, 128], strides = [1, 1]} : vector<16x128xf32> to vector<2x128xf32>
    %cst_50 = arith.constant dense<0.000000e+00> : vector<2x128xf32>
    %311 = tpu.matmul %309, %2, %cst_50 {dimension_numbers = #tpu.dot_dimension_numbers<[1], [0], [0], [1], [0, 0, 1, 1], [], []>} : vector<2x32xf32>, vector<32x128xf32>, vector<2x128xf32> -> vector<2x128xf32>
    %312 = arith.addf %310, %311 : vector<2x128xf32>
    %313 = vector.extract_strided_slice %312 {offsets = [0, 0], sizes = [2, 96], strides = [1, 1]} : vector<2x128xf32> to vector<2x96xf32>
    %314 = arith.negf %313 : vector<2x96xf32>
    %315 = math.exp %314 : vector<2x96xf32>
    %cst_51 = arith.constant 1.000000e+00 : f32
    %316 = vector.broadcast %cst_51 : f32 to vector<2x96xf32>
    %317 = arith.addf %316, %315 : vector<2x96xf32>
    %318 = arith.divf %316, %317 : vector<2x96xf32>
    %319 = vector.extract_strided_slice %312 {offsets = [0, 96], sizes = [2, 32], strides = [1, 1]} : vector<2x128xf32> to vector<2x32xf32>
    %320 = math.tanh %319 : vector<2x32xf32>
    %321 = vector.extract_strided_slice %318 {offsets = [0, 0], sizes = [2, 32], strides = [1, 1]} : vector<2x96xf32> to vector<2x32xf32>
    %322 = vector.extract_strided_slice %318 {offsets = [0, 32], sizes = [2, 32], strides = [1, 1]} : vector<2x96xf32> to vector<2x32xf32>
    %323 = vector.extract_strided_slice %318 {offsets = [0, 64], sizes = [2, 32], strides = [1, 1]} : vector<2x96xf32> to vector<2x32xf32>
    %324 = arith.mulf %322, %307 : vector<2x32xf32>
    %325 = arith.mulf %321, %320 : vector<2x32xf32>
    %326 = arith.addf %324, %325 : vector<2x32xf32>
    %327 = math.tanh %326 : vector<2x32xf32>
    %328 = arith.mulf %323, %327 : vector<2x32xf32>
    %329 = vector.extract_strided_slice %214 {offsets = [12, 0], sizes = [2, 128], strides = [1, 1]} : vector<16x128xf32> to vector<2x128xf32>
    %cst_52 = arith.constant dense<0.000000e+00> : vector<2x128xf32>
    %330 = tpu.matmul %328, %2, %cst_52 {dimension_numbers = #tpu.dot_dimension_numbers<[1], [0], [0], [1], [0, 0, 1, 1], [], []>} : vector<2x32xf32>, vector<32x128xf32>, vector<2x128xf32> -> vector<2x128xf32>
    %331 = arith.addf %329, %330 : vector<2x128xf32>
    %332 = vector.extract_strided_slice %331 {offsets = [0, 0], sizes = [2, 96], strides = [1, 1]} : vector<2x128xf32> to vector<2x96xf32>
    %333 = arith.negf %332 : vector<2x96xf32>
    %334 = math.exp %333 : vector<2x96xf32>
    %cst_53 = arith.constant 1.000000e+00 : f32
    %335 = vector.broadcast %cst_53 : f32 to vector<2x96xf32>
    %336 = arith.addf %335, %334 : vector<2x96xf32>
    %337 = arith.divf %335, %336 : vector<2x96xf32>
    %338 = vector.extract_strided_slice %331 {offsets = [0, 96], sizes = [2, 32], strides = [1, 1]} : vector<2x128xf32> to vector<2x32xf32>
    %339 = math.tanh %338 : vector<2x32xf32>
    %340 = vector.extract_strided_slice %337 {offsets = [0, 0], sizes = [2, 32], strides = [1, 1]} : vector<2x96xf32> to vector<2x32xf32>
    %341 = vector.extract_strided_slice %337 {offsets = [0, 32], sizes = [2, 32], strides = [1, 1]} : vector<2x96xf32> to vector<2x32xf32>
    %342 = vector.extract_strided_slice %337 {offsets = [0, 64], sizes = [2, 32], strides = [1, 1]} : vector<2x96xf32> to vector<2x32xf32>
    %343 = arith.mulf %341, %326 : vector<2x32xf32>
    %344 = arith.mulf %340, %339 : vector<2x32xf32>
    %345 = arith.addf %343, %344 : vector<2x32xf32>
    %346 = math.tanh %345 : vector<2x32xf32>
    %347 = arith.mulf %342, %346 : vector<2x32xf32>
    %348 = vector.extract_strided_slice %214 {offsets = [14, 0], sizes = [2, 128], strides = [1, 1]} : vector<16x128xf32> to vector<2x128xf32>
    %cst_54 = arith.constant dense<0.000000e+00> : vector<2x128xf32>
    %349 = tpu.matmul %347, %2, %cst_54 {dimension_numbers = #tpu.dot_dimension_numbers<[1], [0], [0], [1], [0, 0, 1, 1], [], []>} : vector<2x32xf32>, vector<32x128xf32>, vector<2x128xf32> -> vector<2x128xf32>
    %350 = arith.addf %348, %349 : vector<2x128xf32>
    %351 = vector.extract_strided_slice %350 {offsets = [0, 0], sizes = [2, 96], strides = [1, 1]} : vector<2x128xf32> to vector<2x96xf32>
    %352 = arith.negf %351 : vector<2x96xf32>
    %353 = math.exp %352 : vector<2x96xf32>
    %cst_55 = arith.constant 1.000000e+00 : f32
    %354 = vector.broadcast %cst_55 : f32 to vector<2x96xf32>
    %355 = arith.addf %354, %353 : vector<2x96xf32>
    %356 = arith.divf %354, %355 : vector<2x96xf32>
    %357 = vector.extract_strided_slice %350 {offsets = [0, 96], sizes = [2, 32], strides = [1, 1]} : vector<2x128xf32> to vector<2x32xf32>
    %358 = math.tanh %357 : vector<2x32xf32>
    %359 = vector.extract_strided_slice %356 {offsets = [0, 0], sizes = [2, 32], strides = [1, 1]} : vector<2x96xf32> to vector<2x32xf32>
    %360 = vector.extract_strided_slice %356 {offsets = [0, 32], sizes = [2, 32], strides = [1, 1]} : vector<2x96xf32> to vector<2x32xf32>
    %361 = vector.extract_strided_slice %356 {offsets = [0, 64], sizes = [2, 32], strides = [1, 1]} : vector<2x96xf32> to vector<2x32xf32>
    %362 = arith.mulf %360, %345 : vector<2x32xf32>
    %363 = arith.mulf %359, %358 : vector<2x32xf32>
    %364 = arith.addf %362, %363 : vector<2x32xf32>
    %365 = math.tanh %364 : vector<2x32xf32>
    %366 = arith.mulf %361, %365 : vector<2x32xf32>
    %cst_56 = arith.constant dense<0.000000e+00> : vector<2x128xf32>
    %367 = tpu.matmul %366, %4, %cst_56 {dimension_numbers = #tpu.dot_dimension_numbers<[1], [0], [0], [1], [0, 0, 1, 1], [], []>} : vector<2x32xf32>, vector<32x128xf32>, vector<2x128xf32> -> vector<2x128xf32>
    %368 = vector.broadcast %5 : vector<1x128xf32> to vector<2x128xf32>
    %369 = arith.addf %367, %368 : vector<2x128xf32>
    %370 = arith.negf %369 : vector<2x128xf32>
    %371 = math.exp %370 : vector<2x128xf32>
    %cst_57 = arith.constant 1.000000e+00 : f32
    %372 = vector.broadcast %cst_57 : f32 to vector<2x128xf32>
    %373 = arith.addf %372, %371 : vector<2x128xf32>
    %374 = arith.divf %372, %373 : vector<2x128xf32>
    %375 = tpu.concatenate %210, %208, %366, %364 in 1 : vector<2x32xf32>, vector<2x32xf32>, vector<2x32xf32>, vector<2x32xf32> -> vector<2x128xf32>
    %cst_58 = arith.constant 0.000000e+00 : f32
    %376 = vector.broadcast %cst_58 : f32 to vector<4x128xf32>
    %377 = tpu.concatenate %375, %374, %376 in 0 : vector<2x128xf32>, vector<2x128xf32>, vector<4x128xf32> -> vector<8x128xf32>
    %c0_59 = arith.constant 0 : index
    %c0_60 = arith.constant 0 : index
    %378 = vector.load %arg3[%c0_59, %c0_60] : memref<8x128xf32, #tpu.memory_space<vmem>>, vector<8x128xf32>
    tpu.vector_store %arg3[%c0_59, %c0_60], %377 {strides = array<i32>} : memref<8x128xf32, #tpu.memory_space<vmem>>, vector<8x128xf32>,
    return
  }
}

</mosaic_0001>

<llo_original>
// kernel: sentiment_rnn_forward.1
$region0: #{sentiment_rnn_forward.1}
  #allocation0 [shape = 'u32[]', space=smem, size = 0x4, offset = 0x4, fixed_abs, tag = 'smem constant byte address 0x4 - core index']
  #allocation1 [shape = 'u32[144,128]{1,0:T(1,128)}', space=vmem, size = 0x12000, scoped, tag = 'internal scratch']
  %s0 = inlined_call_operand.vmem [shape: s32[16], index: 0, kind: input, shape index: {}]
  %s1 = inlined_call_operand.hbm [shape: f32[200,128], index: 1, kind: input, shape index: {}]
  %s2 = inlined_call_operand.vmem [shape: f32[2,128], index: 2, kind: input, shape index: {}]
  %s3 = inlined_call_operand.vmem [shape: f32[8,128], index: 3, kind: output, shape index: {}]
  %s4 = sld [smem:[#allocation0]]
  $region30: #{sentiment_rnn_forward.1} parent=0
    _
  %s6 = ssub.s32 1, %s4
  %s7 = scalar_select 0, %s6, %s4
  $region1: #{sentiment_rnn_forward.1} parent=0
    #allocation2 [shape = 'u8[512]{0}', space=smem, size = 0x200, scoped, tag = 'input window, operand 0, single buffered']
    #allocation3 [shape = 's32[1]{0}', space=sflag, size = 0x4, scoped, tag = 'scoped memory for sentiment_rnn_forward.1']
    #allocation4 [shape = 's32[1]{0}', space=sflag, size = 0x4, scoped, tag = 'scoped memory for sentiment_rnn_forward.1']
    #allocation5 [shape = 'u8[102400]{0}', space=vmem, size = 0x19000, scoped, tag = 'input window, operand 1, single buffered']
    %8 = vsyncpa [#allocation4], 0
    %9 = vsyncpa [#allocation3], 0
    // Predicated region
    $region2: #{sentiment_rnn_forward.1} parent=1 // pred_check
      _
    $region3: #{sentiment_rnn_forward.1} parent=1 // pred_check_branch
      %11 = sbr.rel (0) target = $region5
    $region4: #{sentiment_rnn_forward.1} parent=1 // pred_region
      %s13 = ssub.s32 16, 16
      %14 = vsyncadd [#allocation4], %s13
      %s16 = sshll.u32 %s0, 4
      %s17 = int_to_ptr.vmem [resolvable:$true] %s16
      %19 = dma.vmem_to_smem %s17, 16, [#allocation2], [#allocation4]
    $region5: #{sentiment_rnn_forward.1} parent=1 // pred_fallthru
      _
    // Predicated region
    $region6: #{sentiment_rnn_forward.1} parent=1 // pred_check
      _
    $region7: #{sentiment_rnn_forward.1} parent=1 // pred_check_branch
      %21 = sbr.rel (0) target = $region9
    $region8: #{sentiment_rnn_forward.1} parent=1 // pred_region
      %s23 = ssub.s32 3200, 3200
      %24 = vsyncadd [#allocation3], %s23
      %s25 = sshll.u32 [#allocation5], 4
      %s26 = int_to_ptr.vmem [resolvable:$true] %s25
      %31 = dma.hbm_to_vmem [thread:$0]  %s1, 3200, %s26, [#allocation3], 128, 128, 8
    $region9: #{sentiment_rnn_forward.1} parent=1 // pred_fallthru
      _
    // Predicated region
    $region10: #{sentiment_rnn_forward.1} parent=1 // pred_check
      _
    $region11: #{sentiment_rnn_forward.1} parent=1 // pred_check_branch
      %33 = sbr.rel (0) target = $region13
    $region12: #{sentiment_rnn_forward.1} parent=1 // pred_region
      _
    $region13: #{sentiment_rnn_forward.1} parent=1 // pred_fallthru
      _
    // Predicated region
    $region14: #{sentiment_rnn_forward.1} parent=1 // pred_check
      _
    $region15: #{sentiment_rnn_forward.1} parent=1 // pred_check_branch
      %35 = sbr.rel (0) target = $region17
    $region16: #{sentiment_rnn_forward.1} parent=1 // pred_region
      %36 = dma.done [#allocation4], 16
    $region17: #{sentiment_rnn_forward.1} parent=1 // pred_fallthru
      _
    // Predicated region
    $region18: #{sentiment_rnn_forward.1} parent=1 // pred_check
      _
    $region19: #{sentiment_rnn_forward.1} parent=1 // pred_check_branch
      %38 = sbr.rel (0) target = $region21
    $region20: #{sentiment_rnn_forward.1} parent=1 // pred_region
      %39 = dma.done [#allocation3], 3200
    $region21: #{sentiment_rnn_forward.1} parent=1 // pred_fallthru
      _
    %40 = sfence
    %v41 = vld [vmem:[#allocation5 + $0x38] sm:$0xff]
    %v42 = vld [vmem:[#allocation5 + $0x40] sm:$0xff]
    %v43 = vld [vmem:[#allocation5 + $0x48] sm:$0xff]
    %v44 = vld [vmem:[#allocation5 + $0x50] sm:$0xff]
    %v45 = vld [vmem:[#allocation5 + $0x58] sm:$0xff]
    %v46 = vld [vmem:[#allocation5 + $0x60] sm:$0xff]
    %v47 = vld [vmem:[#allocation5 + $0x68] sm:$0xff]
    %v48 = vld [vmem:[#allocation5 + $0x70] sm:$0xff]
    %v49 = vld [vmem:[#allocation5 + $0x78] sm:$0xff]
    %v50 = vld [vmem:[#allocation5 + $0x80] sm:$0xff]
    %v51 = vld [vmem:[#allocation5 + $0x88] sm:$0xff]
    %v52 = vld [vmem:[#allocation5 + $0x90] sm:$0xff]
    %v53 = vld [vmem:[#allocation5 + $0x98] sm:$0x1]
    %v54 = vld [vmem:[#allocation5 + $0xa0] sm:$0xff]
    %v55 = vld [vmem:[#allocation5 + $0xa8] sm:$0xff]
    %v56 = vld [vmem:[#allocation5 + $0xb0] sm:$0xff]
    %v57 = vld [vmem:[#allocation5 + $0xb8] sm:$0xff]
    %v58 = vld [vmem:[#allocation5 + $0xc0] sm:$0x1]
    %v59 = vld [vmem:[%s2] sm:$0x3]
    %s60 = sld [smem:[#allocation2]]
    %s61 = scalar_lea.vmem [#allocation5], %s60
    %v62 = vld [vmem:[%s61] sm:$0x1]
    %s63 = sld [smem:[#allocation2 + $0x8]]
    %s64 = scalar_lea.vmem [#allocation5], %s63
    %v65 = vld [vmem:[%s64] sm:$0x1]
    %v67 = vrot.slane %v65, 7
    %vm69 = vcmask 1040384
    %v70 = vsel %vm69, %v62, %v67
    %s71 = sld [smem:[#allocation2 + $0x1]]
    %s72 = scalar_lea.vmem [#allocation5], %s71
    %v73 = vld [vmem:[%s72] sm:$0x1]
    %s74 = sld [smem:[#allocation2 + $0x9]]
    %s75 = scalar_lea.vmem [#allocation5], %s74
    %v76 = vld [vmem:[%s75] sm:$0x1]
    %v78 = vrot.slane %v76, 7
    %v80 = vsel %vm69, %v73, %v78
    %s81 = sld [smem:[#allocation2 + $0x2]]
    %s82 = scalar_lea.vmem [#allocation5], %s81
    %v83 = vld [vmem:[%s82] sm:$0x1]
    %s84 = sld [smem:[#allocation2 + $0xa]]
    %s85 = scalar_lea.vmem [#allocation5], %s84
    %v86 = vld [vmem:[%s85] sm:$0x1]
    %v88 = vrot.slane %v86, 7
    %v90 = vsel %vm69, %v83, %v88
    %s91 = sld [smem:[#allocation2 + $0x3]]
    %s92 = scalar_lea.vmem [#allocation5], %s91
    %v93 = vld [vmem:[%s92] sm:$0x1]
    %s94 = sld [smem:[#allocation2 + $0xb]]
    %s95 = scalar_lea.vmem [#allocation5], %s94
    %v96 = vld [vmem:[%s95] sm:$0x1]
    %v98 = vrot.slane %v96, 7
    %v100 = vsel %vm69, %v93, %v98
    %s101 = sld [smem:[#allocation2 + $0x4]]
    %s102 = scalar_lea.vmem [#allocation5], %s101
    %v103 = vld [vmem:[%s102] sm:$0x1]
    %s104 = sld [smem:[#allocation2 + $0xc]]
    %s105 = scalar_lea.vmem [#allocation5], %s104
    %v106 = vld [vmem:[%s105] sm:$0x1]
    %v108 = vrot.slane %v106, 7
    %v110 = vsel %vm69, %v103, %v108
    %s111 = sld [smem:[#allocation2 + $0x5]]
    %s112 = scalar_lea.vmem [#allocation5], %s111
    %v113 = vld [vmem:[%s112] sm:$0x1]
    %s114 = sld [smem:[#allocation2 + $0xd]]
    %s115 = scalar_lea.vmem [#allocation5], %s114
    %v116 = vld [vmem:[%s115] sm:$0x1]
    %v118 = vrot.slane %v116, 7
    %v120 = vsel %vm69, %v113, %v118
    %s121 = sld [smem:[#allocation2 + $0x6]]
    %s122 = scalar_lea.vmem [#allocation5], %s121
    %v123 = vld [vmem:[%s122] sm:$0x1]
    %s124 = sld [smem:[#allocation2 + $0xe]]
    %s125 = scalar_lea.vmem [#allocation5], %s124
    %v126 = vld [vmem:[%s125] sm:$0x1]
    %v128 = vrot.slane %v126, 7
    %v130 = vsel %vm69, %v123, %v128
    %s131 = sld [smem:[#allocation2 + $0x7]]
    %s132 = scalar_lea.vmem [#allocation5], %s131
    %v133 = vld [vmem:[%s132] sm:$0x1]
    %s134 = sld [smem:[#allocation2 + $0xf]]
    %s135 = scalar_lea.vmem [#allocation5], %s134
    %v136 = vld [vmem:[%s135] sm:$0x1]
    %v138 = vrot.slane %v136, 7
    %v140 = vsel %vm69, %v133, %v138
    %vm141 = vcmask 261120
    %v143 = vsel %vm141, %v59, 0
    %145 = vmatprep.subr.mxu0 0.0
    %146 = vmatpush1.msra.mxu0 %v41
    %147 = vmatprep.subr.mxu0 0.0
    %148 = vmatpush1.msra.mxu0 %v42
    %149 = vmatprep.subr.mxu0 0.0
    %150 = vmatpush1.msra.mxu0 %v43
    %151 = vmatprep.subr.mxu0 0.0
    %152 = vmatpush1.msra.mxu0 %v44
    %153 = vmatprep.subr.mxu0 0.0
    %154 = vmatpush1.msra.mxu0 0.0
    %155 = vmatprep.subr.mxu0 0.0
    %156 = vmatpush1.msra.mxu0 0.0
    %157 = vmatprep.subr.mxu0 0.0
    %158 = vmatpush1.msra.mxu0 0.0
    %159 = vmatprep.subr.mxu0 0.0
    %160 = vmatpush1.msra.mxu0 0.0
    %161 = vmatprep.subr.mxu0 0.0
    %162 = vmatpush1.msra.mxu0 0.0
    %163 = vmatprep.subr.mxu0 0.0
    %164 = vmatpush1.msra.mxu0 0.0
    %165 = vmatprep.subr.mxu0 0.0
    %166 = vmatpush1.msra.mxu0 0.0
    %167 = vmatprep.subr.mxu0 0.0
    %168 = vmatpush1.msra.mxu0 0.0
    %169 = vmatprep.subr.mxu0 0.0
    %170 = vmatpush1.msra.mxu0 0.0
    %171 = vmatprep.subr.mxu0 0.0
    %172 = vmatpush1.msra.mxu0 0.0
    %173 = vmatprep.subr.mxu0 0.0
    %174 = vmatpush1.msra.mxu0 0.0
    %175 = vmatprep.subr.mxu0 0.0
    %176 = vmatpush1.msra.mxu0 0.0
    %177 = vmatprep.subr.mxu0 0.0
    %178 = vmatpush1.msra.mxu0 0.0
    %179 = vmatprep.subr.mxu0 0.0
    %180 = vmatpush1.msra.mxu0 0.0
    %181 = vmatprep.subr.mxu0 0.0
    %182 = vmatpush1.msra.mxu0 0.0
    %183 = vmatprep.subr.mxu0 0.0
    %184 = vmatpush1.msra.mxu0 0.0
    %185 = vmatprep.subr.mxu0 0.0
    %186 = vmatpush1.msra.mxu0 0.0
    %187 = vmatprep.subr.mxu0 0.0
    %188 = vmatpush1.msra.mxu0 0.0
    %189 = vmatprep.subr.mxu0 0.0
    %190 = vmatpush1.msra.mxu0 0.0
    %191 = vmatprep.subr.mxu0 0.0
    %192 = vmatpush1.msra.mxu0 0.0
    %193 = vmatprep.subr.mxu0 0.0
    %194 = vmatpush1.msra.mxu0 0.0
    %195 = vmatprep.subr.mxu0 0.0
    %196 = vmatpush1.msra.mxu0 0.0
    %197 = vmatprep.subr.mxu0 0.0
    %198 = vmatpush1.msra.mxu0 0.0
    %199 = vmatprep.subr.mxu0 0.0
    %200 = vmatpush1.msra.mxu0 0.0
    %201 = vmatprep.subr.mxu0 0.0
    %202 = vmatpush1.msra.mxu0 0.0
    %203 = vmatprep.subr.mxu0 0.0
    %204 = vmatpush1.msra.mxu0 0.0
    %205 = vmatprep.subr.mxu0 0.0
    %206 = vmatpush1.msra.mxu0 0.0
    %207 = vmatprep.subr.mxu0 0.0
    %208 = vmatpush1.msra.mxu0 0.0
    %209 = vmatprep.mubr.f32.mxu0 0.0
    %210 = vmatmul.mubr.f32.gmra.mrb[0].mxu0 %v143
    %v211 = vpop.f32.mrb[0].mxu0
    %v212 = vadd.f32 0.0, %v211
    %v213 = vpop.f32.mrb[0].mxu0
    %214 = vdwg.mxu0
    %v215 = vadd.f32 %v70, %v212
    %v216 = vxor.u32 %v215, 2147483648
    %v217 = vmul.f32 %v216, 1.442695
    %v218 = vpow.pop %v217
    %v219 = vadd.f32 %v218, 1.0
    %v220 = vrcp.pop %v219
    %v221 = vmul.f32 1.0, %v220
    %v222 = vtanh.pop %v215
    %v223 = vmul.f32 %v221, %v59
    %225 = vrot.lane.b32.xlu0 %v222, 32
    %v226 = vpop.permute.xlu0 %225
    %v228 = vmul.f32 %v221, %v226
    %230 = vrot.lane.b32.xlu0 %v228, 32
    %v231 = vpop.permute.xlu0 %230
    %v233 = vadd.f32 %v223, %v231
    %v234 = vtanh.pop %v233
    %236 = vrot.lane.b32.xlu0 %v234, 32
    %v237 = vpop.permute.xlu0 %236
    %v239 = vmul.f32 %v221, %v237
    %241 = vrot.lane.b32.xlu0 %v239, 64
    %v242 = vpop.permute.xlu0 %241
    %v243 = vsel %vm141, %v242, 0
    %245 = vmatprep.subr.mxu0 0.0
    %246 = vmatpush1.msra.mxu0 %v41
    %247 = vmatprep.subr.mxu0 0.0
    %248 = vmatpush1.msra.mxu0 %v42
    %249 = vmatprep.subr.mxu0 0.0
    %250 = vmatpush1.msra.mxu0 %v43
    %251 = vmatprep.subr.mxu0 0.0
    %252 = vmatpush1.msra.mxu0 %v44
    %253 = vmatprep.subr.mxu0 0.0
    %254 = vmatpush1.msra.mxu0 0.0
    %255 = vmatprep.subr.mxu0 0.0
    %256 = vmatpush1.msra.mxu0 0.0
    %257 = vmatprep.subr.mxu0 0.0
    %258 = vmatpush1.msra.mxu0 0.0
    %259 = vmatprep.subr.mxu0 0.0
    %260 = vmatpush1.msra.mxu0 0.0
    %261 = vmatprep.subr.mxu0 0.0
    %262 = vmatpush1.msra.mxu0 0.0
    %263 = vmatprep.subr.mxu0 0.0
    %264 = vmatpush1.msra.mxu0 0.0
    %265 = vmatprep.subr.mxu0 0.0
    %266 = vmatpush1.msra.mxu0 0.0
    %267 = vmatprep.subr.mxu0 0.0
    %268 = vmatpush1.msra.mxu0 0.0
    %269 = vmatprep.subr.mxu0 0.0
    %270 = vmatpush1.msra.mxu0 0.0
    %271 = vmatprep.subr.mxu0 0.0
    %272 = vmatpush1.msra.mxu0 0.0
    %273 = vmatprep.subr.mxu0 0.0
    %274 = vmatpush1.msra.mxu0 0.0
    %275 = vmatprep.subr.mxu0 0.0
    %276 = vmatpush1.msra.mxu0 0.0
    %277 = vmatprep.subr.mxu0 0.0
    %278 = vmatpush1.msra.mxu0 0.0
    %279 = vmatprep.subr.mxu0 0.0
    %280 = vmatpush1.msra.mxu0 0.0
    %281 = vmatprep.subr.mxu0 0.0
    %282 = vmatpush1.msra.mxu0 0.0
    %283 = vmatprep.subr.mxu0 0.0
    %284 = vmatpush1.msra.mxu0 0.0
    %285 = vmatprep.subr.mxu0 0.0
    %286 = vmatpush1.msra.mxu0 0.0
    %287 = vmatprep.subr.mxu0 0.0
    %288 = vmatpush1.msra.mxu0 0.0
    %289 = vmatprep.subr.mxu0 0.0
    %290 = vmatpush1.msra.mxu0 0.0
    %291 = vmatprep.subr.mxu0 0.0
    %292 = vmatpush1.msra.mxu0 0.0
    %293 = vmatprep.subr.mxu0 0.0
    %294 = vmatpush1.msra.mxu0 0.0
    %295 = vmatprep.subr.mxu0 0.0
    %296 = vmatpush1.msra.mxu0 0.0
    %297 = vmatprep.subr.mxu0 0.0
    %298 = vmatpush1.msra.mxu0 0.0
    %299 = vmatprep.subr.mxu0 0.0
    %300 = vmatpush1.msra.mxu0 0.0
    %301 = vmatprep.subr.mxu0 0.0
    %302 = vmatpush1.msra.mxu0 0.0
    %303 = vmatprep.subr.mxu0 0.0
    %304 = vmatpush1.msra.mxu0 0.0
    %305 = vmatprep.subr.mxu0 0.0
    %306 = vmatpush1.msra.mxu0 0.0
    %307 = vmatprep.subr.mxu0 0.0
    %308 = vmatpush1.msra.mxu0 0.0
    %309 = vmatprep.mubr.f32.mxu0 0.0
    %310 = vmatmul.mubr.f32.gmra.mrb[0].mxu0 %v243
    %v311 = vpop.f32.mrb[0].mxu0
    %v312 = vadd.f32 0.0, %v311
    %v313 = vpop.f32.mrb[0].mxu0
    %314 = vdwg.mxu0
    %v315 = vadd.f32 %v80, %v312
    %v316 = vxor.u32 %v315, 2147483648
    %v317 = vmul.f32 %v316, 1.442695
    %v318 = vpow.pop %v317
    %v319 = vadd.f32 %v318, 1.0
    %v320 = vrcp.pop %v319
    %v321 = vmul.f32 1.0, %v320
    %v322 = vtanh.pop %v315
    %v323 = vmul.f32 %v321, %v233
    %325 = vrot.lane.b32.xlu0 %v322, 32
    %v326 = vpop.permute.xlu0 %325
    %v328 = vmul.f32 %v321, %v326
    %330 = vrot.lane.b32.xlu0 %v328, 32
    %v331 = vpop.permute.xlu0 %330
    %v333 = vadd.f32 %v323, %v331
    %v334 = vtanh.pop %v333
    %336 = vrot.lane.b32.xlu0 %v334, 32
    %v337 = vpop.permute.xlu0 %336
    %v339 = vmul.f32 %v321, %v337
    %341 = vrot.lane.b32.xlu0 %v339, 64
    %v342 = vpop.permute.xlu0 %341
    %v343 = vsel %vm141, %v342, 0
    %345 = vmatprep.subr.mxu0 0.0
    %346 = vmatpush1.msra.mxu0 %v41
    %347 = vmatprep.subr.mxu0 0.0
    %348 = vmatpush1.msra.mxu0 %v42
    %349 = vmatprep.subr.mxu0 0.0
    %350 = vmatpush1.msra.mxu0 %v43
    %351 = vmatprep.subr.mxu0 0.0
    %352 = vmatpush1.msra.mxu0 %v44
    %353 = vmatprep.subr.mxu0 0.0
    %354 = vmatpush1.msra.mxu0 0.0
    %355 = vmatprep.subr.mxu0 0.0
    %356 = vmatpush1.msra.mxu0 0.0
    %357 = vmatprep.subr.mxu0 0.0
    %358 = vmatpush1.msra.mxu0 0.0
    %359 = vmatprep.subr.mxu0 0.0
    %360 = vmatpush1.msra.mxu0 0.0
    %361 = vmatprep.subr.mxu0 0.0
    %362 = vmatpush1.msra.mxu0 0.0
    %363 = vmatprep.subr.mxu0 0.0
    %364 = vmatpush1.msra.mxu0 0.0
    %365 = vmatprep.subr.mxu0 0.0
    %366 = vmatpush1.msra.mxu0 0.0
    %367 = vmatprep.subr.mxu0 0.0
    %368 = vmatpush1.msra.mxu0 0.0
    %369 = vmatprep.subr.mxu0 0.0
    %370 = vmatpush1.msra.mxu0 0.0
    %371 = vmatprep.subr.mxu0 0.0
    %372 = vmatpush1.msra.mxu0 0.0
    %373 = vmatprep.subr.mxu0 0.0
    %374 = vmatpush1.msra.mxu0 0.0
    %375 = vmatprep.subr.mxu0 0.0
    %376 = vmatpush1.msra.mxu0 0.0
    %377 = vmatprep.subr.mxu0 0.0
    %378 = vmatpush1.msra.mxu0 0.0
    %379 = vmatprep.subr.mxu0 0.0
    %380 = vmatpush1.msra.mxu0 0.0
    %381 = vmatprep.subr.mxu0 0.0
    %382 = vmatpush1.msra.mxu0 0.0
    %383 = vmatprep.subr.mxu0 0.0
    %384 = vmatpush1.msra.mxu0 0.0
    %385 = vmatprep.subr.mxu0 0.0
    %386 = vmatpush1.msra.mxu0 0.0
    %387 = vmatprep.subr.mxu0 0.0
    %388 = vmatpush1.msra.mxu0 0.0
    %389 = vmatprep.subr.mxu0 0.0
    %390 = vmatpush1.msra.mxu0 0.0
    %391 = vmatprep.subr.mxu0 0.0
    %392 = vmatpush1.msra.mxu0 0.0
    %393 = vmatprep.subr.mxu0 0.0
    %394 = vmatpush1.msra.mxu0 0.0
    %395 = vmatprep.subr.mxu0 0.0
    %396 = vmatpush1.msra.mxu0 0.0
    %397 = vmatprep.subr.mxu0 0.0
    %398 = vmatpush1.msra.mxu0 0.0
    %399 = vmatprep.subr.mxu0 0.0
    %400 = vmatpush1.msra.mxu0 0.0
    %401 = vmatprep.subr.mxu0 0.0
    %402 = vmatpush1.msra.mxu0 0.0
    %403 = vmatprep.subr.mxu0 0.0
    %404 = vmatpush1.msra.mxu0 0.0
    %405 = vmatprep.subr.mxu0 0.0
    %406 = vmatpush1.msra.mxu0 0.0
    %407 = vmatprep.subr.mxu0 0.0
    %408 = vmatpush1.msra.mxu0 0.0
    %409 = vmatprep.mubr.f32.mxu0 0.0
    %410 = vmatmul.mubr.f32.gmra.mrb[0].mxu0 %v343
    %v411 = vpop.f32.mrb[0].mxu0
    %v412 = vadd.f32 0.0, %v411
    %v413 = vpop.f32.mrb[0].mxu0
    %414 = vdwg.mxu0
    %v415 = vadd.f32 %v90, %v412
    %v416 = vxor.u32 %v415, 2147483648
    %v417 = vmul.f32 %v416, 1.442695
    %v418 = vpow.pop %v417
    %v419 = vadd.f32 %v418, 1.0
    %v420 = vrcp.pop %v419
    %v421 = vmul.f32 1.0, %v420
    %v422 = vtanh.pop %v415
    %v423 = vmul.f32 %v421, %v333
    %425 = vrot.lane.b32.xlu0 %v422, 32
    %v426 = vpop.permute.xlu0 %425
    %v428 = vmul.f32 %v421, %v426
    %430 = vrot.lane.b32.xlu0 %v428, 32
    %v431 = vpop.permute.xlu0 %430
    %v433 = vadd.f32 %v423, %v431
    %v434 = vtanh.pop %v433
    %436 = vrot.lane.b32.xlu0 %v434, 32
    %v437 = vpop.permute.xlu0 %436
    %v439 = vmul.f32 %v421, %v437
    %441 = vrot.lane.b32.xlu0 %v439, 64
    %v442 = vpop.permute.xlu0 %441
    %v443 = vsel %vm141, %v442, 0
    %445 = vmatprep.subr.mxu0 0.0
    %446 = vmatpush1.msra.mxu0 %v41
    %447 = vmatprep.subr.mxu0 0.0
    %448 = vmatpush1.msra.mxu0 %v42
    %449 = vmatprep.subr.mxu0 0.0
    %450 = vmatpush1.msra.mxu0 %v43
    %451 = vmatprep.subr.mxu0 0.0
    %452 = vmatpush1.msra.mxu0 %v44
    %453 = vmatprep.subr.mxu0 0.0
    %454 = vmatpush1.msra.mxu0 0.0
    %455 = vmatprep.subr.mxu0 0.0
    %456 = vmatpush1.msra.mxu0 0.0
    %457 = vmatprep.subr.mxu0 0.0
    %458 = vmatpush1.msra.mxu0 0.0
    %459 = vmatprep.subr.mxu0 0.0
    %460 = vmatpush1.msra.mxu0 0.0
    %461 = vmatprep.subr.mxu0 0.0
    %462 = vmatpush1.msra.mxu0 0.0
    %463 = vmatprep.subr.mxu0 0.0
    %464 = vmatpush1.msra.mxu0 0.0
    %465 = vmatprep.subr.mxu0 0.0
    %466 = vmatpush1.msra.mxu0 0.0
    %467 = vmatprep.subr.mxu0 0.0
    %468 = vmatpush1.msra.mxu0 0.0
    %469 = vmatprep.subr.mxu0 0.0
    %470 = vmatpush1.msra.mxu0 0.0
    %471 = vmatprep.subr.mxu0 0.0
    %472 = vmatpush1.msra.mxu0 0.0
    %473 = vmatprep.subr.mxu0 0.0
    %474 = vmatpush1.msra.mxu0 0.0
    %475 = vmatprep.subr.mxu0 0.0
    %476 = vmatpush1.msra.mxu0 0.0
    %477 = vmatprep.subr.mxu0 0.0
    %478 = vmatpush1.msra.mxu0 0.0
    %479 = vmatprep.subr.mxu0 0.0
    %480 = vmatpush1.msra.mxu0 0.0
    %481 = vmatprep.subr.mxu0 0.0
    %482 = vmatpush1.msra.mxu0 0.0
    %483 = vmatprep.subr.mxu0 0.0
    %484 = vmatpush1.msra.mxu0 0.0
    %485 = vmatprep.subr.mxu0 0.0
    %486 = vmatpush1.msra.mxu0 0.0
    %487 = vmatprep.subr.mxu0 0.0
    %488 = vmatpush1.msra.mxu0 0.0
    %489 = vmatprep.subr.mxu0 0.0
    %490 = vmatpush1.msra.mxu0 0.0
    %491 = vmatprep.subr.mxu0 0.0
    %492 = vmatpush1.msra.mxu0 0.0
    %493 = vmatprep.subr.mxu0 0.0
    %494 = vmatpush1.msra.mxu0 0.0
    %495 = vmatprep.subr.mxu0 0.0
    %496 = vmatpush1.msra.mxu0 0.0
    %497 = vmatprep.subr.mxu0 0.0
    %498 = vmatpush1.msra.mxu0 0.0
    %499 = vmatprep.subr.mxu0 0.0
    %500 = vmatpush1.msra.mxu0 0.0
    %501 = vmatprep.subr.mxu0 0.0
    %502 = vmatpush1.msra.mxu0 0.0
    %503 = vmatprep.subr.mxu0 0.0
    %504 = vmatpush1.msra.mxu0 0.0
    %505 = vmatprep.subr.mxu0 0.0
    %506 = vmatpush1.msra.mxu0 0.0
    %507 = vmatprep.subr.mxu0 0.0
    %508 = vmatpush1.msra.mxu0 0.0
    %509 = vmatprep.mubr.f32.mxu0 0.0
    %510 = vmatmul.mubr.f32.gmra.mrb[0].mxu0 %v443
    %v511 = vpop.f32.mrb[0].mxu0
    %v512 = vadd.f32 0.0, %v511
    %v513 = vpop.f32.mrb[0].mxu0
    %514 = vdwg.mxu0
    %v515 = vadd.f32 %v100, %v512
    %v516 = vxor.u32 %v515, 2147483648
    %v517 = vmul.f32 %v516, 1.442695
    %v518 = vpow.pop %v517
    %v519 = vadd.f32 %v518, 1.0
    %v520 = vrcp.pop %v519
    %v521 = vmul.f32 1.0, %v520
    %v522 = vtanh.pop %v515
    %v523 = vmul.f32 %v521, %v433
    %525 = vrot.lane.b32.xlu0 %v522, 32
    %v526 = vpop.permute.xlu0 %525
    %v528 = vmul.f32 %v521, %v526
    %530 = vrot.lane.b32.xlu0 %v528, 32
    %v531 = vpop.permute.xlu0 %530
    %v533 = vadd.f32 %v523, %v531
    %v534 = vtanh.pop %v533
    %536 = vrot.lane.b32.xlu0 %v534, 32
    %v537 = vpop.permute.xlu0 %536
    %v539 = vmul.f32 %v521, %v537
    %541 = vrot.lane.b32.xlu0 %v539, 64
    %v542 = vpop.permute.xlu0 %541
    %v543 = vsel %vm141, %v542, 0
    %545 = vmatprep.subr.mxu0 0.0
    %546 = vmatpush1.msra.mxu0 %v41
    %547 = vmatprep.subr.mxu0 0.0
    %548 = vmatpush1.msra.mxu0 %v42
    %549 = vmatprep.subr.mxu0 0.0
    %550 = vmatpush1.msra.mxu0 %v43
    %551 = vmatprep.subr.mxu0 0.0
    %552 = vmatpush1.msra.mxu0 %v44
    %553 = vmatprep.subr.mxu0 0.0
    %554 = vmatpush1.msra.mxu0 0.0
    %555 = vmatprep.subr.mxu0 0.0
    %556 = vmatpush1.msra.mxu0 0.0
    %557 = vmatprep.subr.mxu0 0.0
    %558 = vmatpush1.msra.mxu0 0.0
    %559 = vmatprep.subr.mxu0 0.0
    %560 = vmatpush1.msra.mxu0 0.0
    %561 = vmatprep.subr.mxu0 0.0
    %562 = vmatpush1.msra.mxu0 0.0
    %563 = vmatprep.subr.mxu0 0.0
    %564 = vmatpush1.msra.mxu0 0.0
    %565 = vmatprep.subr.mxu0 0.0
    %566 = vmatpush1.msra.mxu0 0.0
    %567 = vmatprep.subr.mxu0 0.0
    %568 = vmatpush1.msra.mxu0 0.0
    %569 = vmatprep.subr.mxu0 0.0
    %570 = vmatpush1.msra.mxu0 0.0
    %571 = vmatprep.subr.mxu0 0.0
    %572 = vmatpush1.msra.mxu0 0.0
    %573 = vmatprep.subr.mxu0 0.0
    %574 = vmatpush1.msra.mxu0 0.0
    %575 = vmatprep.subr.mxu0 0.0
    %576 = vmatpush1.msra.mxu0 0.0
    %577 = vmatprep.subr.mxu0 0.0
    %578 = vmatpush1.msra.mxu0 0.0
    %579 = vmatprep.subr.mxu0 0.0
    %580 = vmatpush1.msra.mxu0 0.0
    %581 = vmatprep.subr.mxu0 0.0
    %582 = vmatpush1.msra.mxu0 0.0
    %583 = vmatprep.subr.mxu0 0.0
    %584 = vmatpush1.msra.mxu0 0.0
    %585 = vmatprep.subr.mxu0 0.0
    %586 = vmatpush1.msra.mxu0 0.0
    %587 = vmatprep.subr.mxu0 0.0
    %588 = vmatpush1.msra.mxu0 0.0
    %589 = vmatprep.subr.mxu0 0.0
    %590 = vmatpush1.msra.mxu0 0.0
    %591 = vmatprep.subr.mxu0 0.0
    %592 = vmatpush1.msra.mxu0 0.0
    %593 = vmatprep.subr.mxu0 0.0
    %594 = vmatpush1.msra.mxu0 0.0
    %595 = vmatprep.subr.mxu0 0.0
    %596 = vmatpush1.msra.mxu0 0.0
    %597 = vmatprep.subr.mxu0 0.0
    %598 = vmatpush1.msra.mxu0 0.0
    %599 = vmatprep.subr.mxu0 0.0
    %600 = vmatpush1.msra.mxu0 0.0
    %601 = vmatprep.subr.mxu0 0.0
    %602 = vmatpush1.msra.mxu0 0.0
    %603 = vmatprep.subr.mxu0 0.0
    %604 = vmatpush1.msra.mxu0 0.0
    %605 = vmatprep.subr.mxu0 0.0
    %606 = vmatpush1.msra.mxu0 0.0
    %607 = vmatprep.subr.mxu0 0.0
    %608 = vmatpush1.msra.mxu0 0.0
    %609 = vmatprep.mubr.f32.mxu0 0.0
    %610 = vmatmul.mubr.f32.gmra.mrb[0].mxu0 %v543
    %v611 = vpop.f32.mrb[0].mxu0
    %v612 = vadd.f32 0.0, %v611
    %v613 = vpop.f32.mrb[0].mxu0
    %614 = vdwg.mxu0
    %v615 = vadd.f32 %v110, %v612
    %v616 = vxor.u32 %v615, 2147483648
    %v617 = vmul.f32 %v616, 1.442695
    %v618 = vpow.pop %v617
    %v619 = vadd.f32 %v618, 1.0
    %v620 = vrcp.pop %v619
    %v621 = vmul.f32 1.0, %v620
    %v622 = vtanh.pop %v615
    %v623 = vmul.f32 %v621, %v533
    %625 = vrot.lane.b32.xlu0 %v622, 32
    %v626 = vpop.permute.xlu0 %625
    %v628 = vmul.f32 %v621, %v626
    %630 = vrot.lane.b32.xlu0 %v628, 32
    %v631 = vpop.permute.xlu0 %630
    %v633 = vadd.f32 %v623, %v631
    %v634 = vtanh.pop %v633
    %636 = vrot.lane.b32.xlu0 %v634, 32
    %v637 = vpop.permute.xlu0 %636
    %v639 = vmul.f32 %v621, %v637
    %641 = vrot.lane.b32.xlu0 %v639, 64
    %v642 = vpop.permute.xlu0 %641
    %v643 = vsel %vm141, %v642, 0
    %645 = vmatprep.subr.mxu0 0.0
    %646 = vmatpush1.msra.mxu0 %v41
    %647 = vmatprep.subr.mxu0 0.0
    %648 = vmatpush1.msra.mxu0 %v42
    %649 = vmatprep.subr.mxu0 0.0
    %650 = vmatpush1.msra.mxu0 %v43
    %651 = vmatprep.subr.mxu0 0.0
    %652 = vmatpush1.msra.mxu0 %v44
    %653 = vmatprep.subr.mxu0 0.0
    %654 = vmatpush1.msra.mxu0 0.0
    %655 = vmatprep.subr.mxu0 0.0
    %656 = vmatpush1.msra.mxu0 0.0
    %657 = vmatprep.subr.mxu0 0.0
    %658 = vmatpush1.msra.mxu0 0.0
    %659 = vmatprep.subr.mxu0 0.0
    %660 = vmatpush1.msra.mxu0 0.0
    %661 = vmatprep.subr.mxu0 0.0
    %662 = vmatpush1.msra.mxu0 0.0
    %663 = vmatprep.subr.mxu0 0.0
    %664 = vmatpush1.msra.mxu0 0.0
    %665 = vmatprep.subr.mxu0 0.0
    %666 = vmatpush1.msra.mxu0 0.0
    %667 = vmatprep.subr.mxu0 0.0
    %668 = vmatpush1.msra.mxu0 0.0
    %669 = vmatprep.subr.mxu0 0.0
    %670 = vmatpush1.msra.mxu0 0.0
    %671 = vmatprep.subr.mxu0 0.0
    %672 = vmatpush1.msra.mxu0 0.0
    %673 = vmatprep.subr.mxu0 0.0
    %674 = vmatpush1.msra.mxu0 0.0
    %675 = vmatprep.subr.mxu0 0.0
    %676 = vmatpush1.msra.mxu0 0.0
    %677 = vmatprep.subr.mxu0 0.0
    %678 = vmatpush1.msra.mxu0 0.0
    %679 = vmatprep.subr.mxu0 0.0
    %680 = vmatpush1.msra.mxu0 0.0
    %681 = vmatprep.subr.mxu0 0.0
    %682 = vmatpush1.msra.mxu0 0.0
    %683 = vmatprep.subr.mxu0 0.0
    %684 = vmatpush1.msra.mxu0 0.0
    %685 = vmatprep.subr.mxu0 0.0
    %686 = vmatpush1.msra.mxu0 0.0
    %687 = vmatprep.subr.mxu0 0.0
    %688 = vmatpush1.msra.mxu0 0.0
    %689 = vmatprep.subr.mxu0 0.0
    %690 = vmatpush1.msra.mxu0 0.0
    %691 = vmatprep.subr.mxu0 0.0
    %692 = vmatpush1.msra.mxu0 0.0
    %693 = vmatprep.subr.mxu0 0.0
    %694 = vmatpush1.msra.mxu0 0.0
    %695 = vmatprep.subr.mxu0 0.0
    %696 = vmatpush1.msra.mxu0 0.0
    %697 = vmatprep.subr.mxu0 0.0
    %698 = vmatpush1.msra.mxu0 0.0
    %699 = vmatprep.subr.mxu0 0.0
    %700 = vmatpush1.msra.mxu0 0.0
    %701 = vmatprep.subr.mxu0 0.0
    %702 = vmatpush1.msra.mxu0 0.0
    %703 = vmatprep.subr.mxu0 0.0
    %704 = vmatpush1.msra.mxu0 0.0
    %705 = vmatprep.subr.mxu0 0.0
    %706 = vmatpush1.msra.mxu0 0.0
    %707 = vmatprep.subr.mxu0 0.0
    %708 = vmatpush1.msra.mxu0 0.0
    %709 = vmatprep.mubr.f32.mxu0 0.0
    %710 = vmatmul.mubr.f32.gmra.mrb[0].mxu0 %v643
    %v711 = vpop.f32.mrb[0].mxu0
    %v712 = vadd.f32 0.0, %v711
    %v713 = vpop.f32.mrb[0].mxu0
    %714 = vdwg.mxu0
    %v715 = vadd.f32 %v120, %v712
    %v716 = vxor.u32 %v715, 2147483648
    %v717 = vmul.f32 %v716, 1.442695
    %v718 = vpow.pop %v717
    %v719 = vadd.f32 %v718, 1.0
    %v720 = vrcp.pop %v719
    %v721 = vmul.f32 1.0, %v720
    %v722 = vtanh.pop %v715
    %v723 = vmul.f32 %v721, %v633
    %725 = vrot.lane.b32.xlu0 %v722, 32
    %v726 = vpop.permute.xlu0 %725
    %v728 = vmul.f32 %v721, %v726
    %730 = vrot.lane.b32.xlu0 %v728, 32
    %v731 = vpop.permute.xlu0 %730
    %v733 = vadd.f32 %v723, %v731
    %v734 = vtanh.pop %v733
    %736 = vrot.lane.b32.xlu0 %v734, 32
    %v737 = vpop.permute.xlu0 %736
    %v739 = vmul.f32 %v721, %v737
    %741 = vrot.lane.b32.xlu0 %v739, 64
    %v742 = vpop.permute.xlu0 %741
    %v743 = vsel %vm141, %v742, 0
    %745 = vmatprep.subr.mxu0 0.0
    %746 = vmatpush1.msra.mxu0 %v41
    %747 = vmatprep.subr.mxu0 0.0
    %748 = vmatpush1.msra.mxu0 %v42
    %749 = vmatprep.subr.mxu0 0.0
    %750 = vmatpush1.msra.mxu0 %v43
    %751 = vmatprep.subr.mxu0 0.0
    %752 = vmatpush1.msra.mxu0 %v44
    %753 = vmatprep.subr.mxu0 0.0
    %754 = vmatpush1.msra.mxu0 0.0
    %755 = vmatprep.subr.mxu0 0.0
    %756 = vmatpush1.msra.mxu0 0.0
    %757 = vmatprep.subr.mxu0 0.0
    %758 = vmatpush1.msra.mxu0 0.0
    %759 = vmatprep.subr.mxu0 0.0
    %760 = vmatpush1.msra.mxu0 0.0
    %761 = vmatprep.subr.mxu0 0.0
    %762 = vmatpush1.msra.mxu0 0.0
    %763 = vmatprep.subr.mxu0 0.0
    %764 = vmatpush1.msra.mxu0 0.0
    %765 = vmatprep.subr.mxu0 0.0
    %766 = vmatpush1.msra.mxu0 0.0
    %767 = vmatprep.subr.mxu0 0.0
    %768 = vmatpush1.msra.mxu0 0.0
    %769 = vmatprep.subr.mxu0 0.0
    %770 = vmatpush1.msra.mxu0 0.0
    %771 = vmatprep.subr.mxu0 0.0
    %772 = vmatpush1.msra.mxu0 0.0
    %773 = vmatprep.subr.mxu0 0.0
    %774 = vmatpush1.msra.mxu0 0.0
    %775 = vmatprep.subr.mxu0 0.0
    %776 = vmatpush1.msra.mxu0 0.0
    %777 = vmatprep.subr.mxu0 0.0
    %778 = vmatpush1.msra.mxu0 0.0
    %779 = vmatprep.subr.mxu0 0.0
    %780 = vmatpush1.msra.mxu0 0.0
    %781 = vmatprep.subr.mxu0 0.0
    %782 = vmatpush1.msra.mxu0 0.0
    %783 = vmatprep.subr.mxu0 0.0
    %784 = vmatpush1.msra.mxu0 0.0
    %785 = vmatprep.subr.mxu0 0.0
    %786 = vmatpush1.msra.mxu0 0.0
    %787 = vmatprep.subr.mxu0 0.0
    %788 = vmatpush1.msra.mxu0 0.0
    %789 = vmatprep.subr.mxu0 0.0
    %790 = vmatpush1.msra.mxu0 0.0
    %791 = vmatprep.subr.mxu0 0.0
    %792 = vmatpush1.msra.mxu0 0.0
    %793 = vmatprep.subr.mxu0 0.0
    %794 = vmatpush1.msra.mxu0 0.0
    %795 = vmatprep.subr.mxu0 0.0
    %796 = vmatpush1.msra.mxu0 0.0
    %797 = vmatprep.subr.mxu0 0.0
    %798 = vmatpush1.msra.mxu0 0.0
    %799 = vmatprep.subr.mxu0 0.0
    %800 = vmatpush1.msra.mxu0 0.0
    %801 = vmatprep.subr.mxu0 0.0
    %802 = vmatpush1.msra.mxu0 0.0
    %803 = vmatprep.subr.mxu0 0.0
    %804 = vmatpush1.msra.mxu0 0.0
    %805 = vmatprep.subr.mxu0 0.0
    %806 = vmatpush1.msra.mxu0 0.0
    %807 = vmatprep.subr.mxu0 0.0
    %808 = vmatpush1.msra.mxu0 0.0
    %809 = vmatprep.mubr.f32.mxu0 0.0
    %810 = vmatmul.mubr.f32.gmra.mrb[0].mxu0 %v743
    %v811 = vpop.f32.mrb[0].mxu0
    %v812 = vadd.f32 0.0, %v811
    %v813 = vpop.f32.mrb[0].mxu0
    %814 = vdwg.mxu0
    %v815 = vadd.f32 %v130, %v812
    %v816 = vxor.u32 %v815, 2147483648
    %v817 = vmul.f32 %v816, 1.442695
    %v818 = vpow.pop %v817
    %v819 = vadd.f32 %v818, 1.0
    %v820 = vrcp.pop %v819
    %v821 = vmul.f32 1.0, %v820
    %v822 = vtanh.pop %v815
    %v823 = vmul.f32 %v821, %v733
    %825 = vrot.lane.b32.xlu0 %v822, 32
    %v826 = vpop.permute.xlu0 %825
    %v828 = vmul.f32 %v821, %v826
    %830 = vrot.lane.b32.xlu0 %v828, 32
    %v831 = vpop.permute.xlu0 %830
    %v833 = vadd.f32 %v823, %v831
    %v834 = vtanh.pop %v833
    %836 = vrot.lane.b32.xlu0 %v834, 32
    %v837 = vpop.permute.xlu0 %836
    %v839 = vmul.f32 %v821, %v837
    %841 = vrot.lane.b32.xlu0 %v839, 64
    %v842 = vpop.permute.xlu0 %841
    %v843 = vsel %vm141, %v842, 0
    %845 = vmatprep.subr.mxu0 0.0
    %846 = vmatpush1.msra.mxu0 %v41
    %847 = vmatprep.subr.mxu0 0.0
    %848 = vmatpush1.msra.mxu0 %v42
    %849 = vmatprep.subr.mxu0 0.0
    %850 = vmatpush1.msra.mxu0 %v43
    %851 = vmatprep.subr.mxu0 0.0
    %852 = vmatpush1.msra.mxu0 %v44
    %853 = vmatprep.subr.mxu0 0.0
    %854 = vmatpush1.msra.mxu0 0.0
    %855 = vmatprep.subr.mxu0 0.0
    %856 = vmatpush1.msra.mxu0 0.0
    %857 = vmatprep.subr.mxu0 0.0
    %858 = vmatpush1.msra.mxu0 0.0
    %859 = vmatprep.subr.mxu0 0.0
    %860 = vmatpush1.msra.mxu0 0.0
    %861 = vmatprep.subr.mxu0 0.0
    %862 = vmatpush1.msra.mxu0 0.0
    %863 = vmatprep.subr.mxu0 0.0
    %864 = vmatpush1.msra.mxu0 0.0
    %865 = vmatprep.subr.mxu0 0.0
    %866 = vmatpush1.msra.mxu0 0.0
    %867 = vmatprep.subr.mxu0 0.0
    %868 = vmatpush1.msra.mxu0 0.0
    %869 = vmatprep.subr.mxu0 0.0
    %870 = vmatpush1.msra.mxu0 0.0
    %871 = vmatprep.subr.mxu0 0.0
    %872 = vmatpush1.msra.mxu0 0.0
    %873 = vmatprep.subr.mxu0 0.0
    %874 = vmatpush1.msra.mxu0 0.0
    %875 = vmatprep.subr.mxu0 0.0
    %876 = vmatpush1.msra.mxu0 0.0
    %877 = vmatprep.subr.mxu0 0.0
    %878 = vmatpush1.msra.mxu0 0.0
    %879 = vmatprep.subr.mxu0 0.0
    %880 = vmatpush1.msra.mxu0 0.0
    %881 = vmatprep.subr.mxu0 0.0
    %882 = vmatpush1.msra.mxu0 0.0
    %883 = vmatprep.subr.mxu0 0.0
    %884 = vmatpush1.msra.mxu0 0.0
    %885 = vmatprep.subr.mxu0 0.0
    %886 = vmatpush1.msra.mxu0 0.0
    %887 = vmatprep.subr.mxu0 0.0
    %888 = vmatpush1.msra.mxu0 0.0
    %889 = vmatprep.subr.mxu0 0.0
    %890 = vmatpush1.msra.mxu0 0.0
    %891 = vmatprep.subr.mxu0 0.0
    %892 = vmatpush1.msra.mxu0 0.0
    %893 = vmatprep.subr.mxu0 0.0
    %894 = vmatpush1.msra.mxu0 0.0
    %895 = vmatprep.subr.mxu0 0.0
    %896 = vmatpush1.msra.mxu0 0.0
    %897 = vmatprep.subr.mxu0 0.0
    %898 = vmatpush1.msra.mxu0 0.0
    %899 = vmatprep.subr.mxu0 0.0
    %900 = vmatpush1.msra.mxu0 0.0
    %901 = vmatprep.subr.mxu0 0.0
    %902 = vmatpush1.msra.mxu0 0.0
    %903 = vmatprep.subr.mxu0 0.0
    %904 = vmatpush1.msra.mxu0 0.0
    %905 = vmatprep.subr.mxu0 0.0
    %906 = vmatpush1.msra.mxu0 0.0
    %907 = vmatprep.subr.mxu0 0.0
    %908 = vmatpush1.msra.mxu0 0.0
    %909 = vmatprep.mubr.f32.mxu0 0.0
    %910 = vmatmul.mubr.f32.gmra.mrb[0].mxu0 %v843
    %v911 = vpop.f32.mrb[0].mxu0
    %v912 = vadd.f32 0.0, %v911
    %v913 = vpop.f32.mrb[0].mxu0
    %914 = vdwg.mxu0
    %v915 = vadd.f32 %v140, %v912
    %v916 = vxor.u32 %v915, 2147483648
    %v917 = vmul.f32 %v916, 1.442695
    %v918 = vpow.pop %v917
    %v919 = vadd.f32 %v918, 1.0
    %v920 = vrcp.pop %v919
    %v921 = vmul.f32 1.0, %v920
    %v922 = vtanh.pop %v915
    %v923 = vmul.f32 %v921, %v833
    %925 = vrot.lane.b32.xlu0 %v922, 32
    %v926 = vpop.permute.xlu0 %925
    %v928 = vmul.f32 %v921, %v926
    %930 = vrot.lane.b32.xlu0 %v928, 32
    %v931 = vpop.permute.xlu0 %930
    %v933 = vadd.f32 %v923, %v931
    %v934 = vtanh.pop %v933
    %936 = vrot.lane.b32.xlu0 %v934, 32
    %v937 = vpop.permute.xlu0 %936
    %v939 = vmul.f32 %v921, %v937
    %v940 = vrot.slane %v339, 6
    %v942 = vrot.slane %v439, 4
    %v944 = vrot.slane %v539, 2
    %v946 = vrot.slane %v739, 6
    %v948 = vrot.slane %v839, 4
    %v951 = vrot.slane %v939, 2
    %vm953 = vcmask 1041408
    %v954 = vsel %vm953, %v239, %v940
    %vm955 = vcmask 1043456
    %v956 = vsel %vm955, %v954, %v942
    %vm957 = vcmask 1045504
    %v958 = vsel %vm957, %v956, %v944
    %v959 = vsel %vm953, %v639, %v946
    %v960 = vsel %vm955, %v959, %v948
    %v961 = vsel %vm957, %v960, %v951
    %v962 = vlaneseq
    %v963 = vshrl.u32 %v962, 7
    %v964 = vsub.s32 0, %v963
    %v965 = vrot.slane %v53, %v964
    %968 = vrot.lane.b32.xlu0 %v958, 64
    %v969 = vpop.permute.xlu0 %968
    %970 = vrot.lane.b32.xlu0 %v961, 64
    %v971 = vpop.permute.xlu0 %970
    %v972 = vsel %vm141, %v969, 0
    %v974 = vsel %vm141, %v971, 0
    %976 = vmatprep.subr.mxu0 0.0
    %977 = vmatpush1.msra.mxu0 %v45
    %978 = vmatprep.subr.mxu0 0.0
    %979 = vmatpush1.msra.mxu0 %v46
    %980 = vmatprep.subr.mxu0 0.0
    %981 = vmatpush1.msra.mxu0 %v47
    %982 = vmatprep.subr.mxu0 0.0
    %983 = vmatpush1.msra.mxu0 %v48
    %984 = vmatprep.subr.mxu0 0.0
    %985 = vmatpush1.msra.mxu0 0.0
    %986 = vmatprep.subr.mxu0 0.0
    %987 = vmatpush1.msra.mxu0 0.0
    %988 = vmatprep.subr.mxu0 0.0
    %989 = vmatpush1.msra.mxu0 0.0
    %990 = vmatprep.subr.mxu0 0.0
    %991 = vmatpush1.msra.mxu0 0.0
    %992 = vmatprep.subr.mxu0 0.0
    %993 = vmatpush1.msra.mxu0 0.0
    %994 = vmatprep.subr.mxu0 0.0
    %995 = vmatpush1.msra.mxu0 0.0
    %996 = vmatprep.subr.mxu0 0.0
    %997 = vmatpush1.msra.mxu0 0.0
    %998 = vmatprep.subr.mxu0 0.0
    %999 = vmatpush1.msra.mxu0 0.0
    %1000 = vmatprep.subr.mxu0 0.0
    %1001 = vmatpush1.msra.mxu0 0.0
    %1002 = vmatprep.subr.mxu0 0.0
    %1003 = vmatpush1.msra.mxu0 0.0
    %1004 = vmatprep.subr.mxu0 0.0
    %1005 = vmatpush1.msra.mxu0 0.0
    %1006 = vmatprep.subr.mxu0 0.0
    %1007 = vmatpush1.msra.mxu0 0.0
    %1008 = vmatprep.subr.mxu0 0.0
    %1009 = vmatpush1.msra.mxu0 0.0
    %1010 = vmatprep.subr.mxu0 0.0
    %1011 = vmatpush1.msra.mxu0 0.0
    %1012 = vmatprep.subr.mxu0 0.0
    %1013 = vmatpush1.msra.mxu0 0.0
    %1014 = vmatprep.subr.mxu0 0.0
    %1015 = vmatpush1.msra.mxu0 0.0
    %1016 = vmatprep.subr.mxu0 0.0
    %1017 = vmatpush1.msra.mxu0 0.0
    %1018 = vmatprep.subr.mxu0 0.0
    %1019 = vmatpush1.msra.mxu0 0.0
    %1020 = vmatprep.subr.mxu0 0.0
    %1021 = vmatpush1.msra.mxu0 0.0
    %1022 = vmatprep.subr.mxu0 0.0
    %1023 = vmatpush1.msra.mxu0 0.0
    %1024 = vmatprep.subr.mxu0 0.0
    %1025 = vmatpush1.msra.mxu0 0.0
    %1026 = vmatprep.subr.mxu0 0.0
    %1027 = vmatpush1.msra.mxu0 0.0
    %1028 = vmatprep.subr.mxu0 0.0
    %1029 = vmatpush1.msra.mxu0 0.0
    %1030 = vmatprep.subr.mxu0 0.0
    %1031 = vmatpush1.msra.mxu0 0.0
    %1032 = vmatprep.subr.mxu0 0.0
    %1033 = vmatpush1.msra.mxu0 0.0
    %1034 = vmatprep.subr.mxu0 0.0
    %1035 = vmatpush1.msra.mxu0 0.0
    %1036 = vmatprep.subr.mxu0 0.0
    %1037 = vmatpush1.msra.mxu0 0.0
    %1038 = vmatprep.subr.mxu0 0.0
    %1039 = vmatpush1.msra.mxu0 0.0
    %1040 = vmatprep.mubr.f32.mxu0 0.0
    %1041 = vmatmul.mubr.f32.gmra.mrb[0].mxu0 %v972
    %v1042 = vpop.f32.mrb[0].mxu0
    %v1043 = vadd.f32 %v965, %v1042
    %v1044 = vpop.f32.mrb[0].mxu0
    %1045 = vmatprep.mubr.f32.mxu0 0.0
    %1046 = vmatmul.mubr.f32.gmra.mrb[0].mxu0 %v974
    %v1047 = vpop.f32.mrb[0].mxu0
    %v1048 = vadd.f32 %v965, %v1047
    %v1049 = vpop.f32.mrb[0].mxu0
    %1050 = vdwg.mxu0
    %1051 = vrot.lane.b32.xlu0 %v59, 64
    %v1052 = vpop.permute.xlu0 %1051
    %v1053 = vsel %vm141, %v1052, 0
    %1055 = vmatprep.subr.mxu0 0.0
    %1056 = vmatpush1.msra.mxu0 %v49
    %1057 = vmatprep.subr.mxu0 0.0
    %1058 = vmatpush1.msra.mxu0 %v50
    %1059 = vmatprep.subr.mxu0 0.0
    %1060 = vmatpush1.msra.mxu0 %v51
    %1061 = vmatprep.subr.mxu0 0.0
    %1062 = vmatpush1.msra.mxu0 %v52
    %1063 = vmatprep.subr.mxu0 0.0
    %1064 = vmatpush1.msra.mxu0 0.0
    %1065 = vmatprep.subr.mxu0 0.0
    %1066 = vmatpush1.msra.mxu0 0.0
    %1067 = vmatprep.subr.mxu0 0.0
    %1068 = vmatpush1.msra.mxu0 0.0
    %1069 = vmatprep.subr.mxu0 0.0
    %1070 = vmatpush1.msra.mxu0 0.0
    %1071 = vmatprep.subr.mxu0 0.0
    %1072 = vmatpush1.msra.mxu0 0.0
    %1073 = vmatprep.subr.mxu0 0.0
    %1074 = vmatpush1.msra.mxu0 0.0
    %1075 = vmatprep.subr.mxu0 0.0
    %1076 = vmatpush1.msra.mxu0 0.0
    %1077 = vmatprep.subr.mxu0 0.0
    %1078 = vmatpush1.msra.mxu0 0.0
    %1079 = vmatprep.subr.mxu0 0.0
    %1080 = vmatpush1.msra.mxu0 0.0
    %1081 = vmatprep.subr.mxu0 0.0
    %1082 = vmatpush1.msra.mxu0 0.0
    %1083 = vmatprep.subr.mxu0 0.0
    %1084 = vmatpush1.msra.mxu0 0.0
    %1085 = vmatprep.subr.mxu0 0.0
    %1086 = vmatpush1.msra.mxu0 0.0
    %1087 = vmatprep.subr.mxu0 0.0
    %1088 = vmatpush1.msra.mxu0 0.0
    %1089 = vmatprep.subr.mxu0 0.0
    %1090 = vmatpush1.msra.mxu0 0.0
    %1091 = vmatprep.subr.mxu0 0.0
    %1092 = vmatpush1.msra.mxu0 0.0
    %1093 = vmatprep.subr.mxu0 0.0
    %1094 = vmatpush1.msra.mxu0 0.0
    %1095 = vmatprep.subr.mxu0 0.0
    %1096 = vmatpush1.msra.mxu0 0.0
    %1097 = vmatprep.subr.mxu0 0.0
    %1098 = vmatpush1.msra.mxu0 0.0
    %1099 = vmatprep.subr.mxu0 0.0
    %1100 = vmatpush1.msra.mxu0 0.0
    %1101 = vmatprep.subr.mxu0 0.0
    %1102 = vmatpush1.msra.mxu0 0.0
    %1103 = vmatprep.subr.mxu0 0.0
    %1104 = vmatpush1.msra.mxu0 0.0
    %1105 = vmatprep.subr.mxu0 0.0
    %1106 = vmatpush1.msra.mxu0 0.0
    %1107 = vmatprep.subr.mxu0 0.0
    %1108 = vmatpush1.msra.mxu0 0.0
    %1109 = vmatprep.subr.mxu0 0.0
    %1110 = vmatpush1.msra.mxu0 0.0
    %1111 = vmatprep.subr.mxu0 0.0
    %1112 = vmatpush1.msra.mxu0 0.0
    %1113 = vmatprep.subr.mxu0 0.0
    %1114 = vmatpush1.msra.mxu0 0.0
    %1115 = vmatprep.subr.mxu0 0.0
    %1116 = vmatpush1.msra.mxu0 0.0
    %1117 = vmatprep.subr.mxu0 0.0
    %1118 = vmatpush1.msra.mxu0 0.0
    %1119 = vmatprep.mubr.f32.mxu0 0.0
    %1120 = vmatmul.mubr.f32.gmra.mrb[0].mxu0 %v1053
    %v1121 = vpop.f32.mrb[0].mxu0
    %v1122 = vadd.f32 0.0, %v1121
    %v1123 = vpop.f32.mrb[0].mxu0
    %1124 = vdwg.mxu0
    %v1125 = vadd.f32 %v1043, %v1122
    %v1126 = vxor.u32 %v1125, 2147483648
    %v1127 = vmul.f32 %v1126, 1.442695
    %v1128 = vpow.pop %v1127
    %v1129 = vadd.f32 %v1128, 1.0
    %v1130 = vrcp.pop %v1129
    %v1131 = vmul.f32 1.0, %v1130
    %v1132 = vtanh.pop %v1125
    %v1134 = vmul.f32 %v1131, %v1052
    %1136 = vrot.lane.b32.xlu0 %v1132, 32
    %v1137 = vpop.permute.xlu0 %1136
    %v1139 = vmul.f32 %v1131, %v1137
    %1141 = vrot.lane.b32.xlu0 %v1139, 32
    %v1142 = vpop.permute.xlu0 %1141
    %v1144 = vadd.f32 %v1134, %v1142
    %v1145 = vtanh.pop %v1144
    %1147 = vrot.lane.b32.xlu0 %v1145, 32
    %v1148 = vpop.permute.xlu0 %1147
    %v1150 = vmul.f32 %v1131, %v1148
    %1152 = vrot.lane.b32.xlu0 %v1150, 64
    %v1153 = vpop.permute.xlu0 %1152
    %v1154 = vsel %vm141, %v1153, 0
    %1156 = vmatprep.subr.mxu0 0.0
    %1157 = vmatpush1.msra.mxu0 %v49
    %1158 = vmatprep.subr.mxu0 0.0
    %1159 = vmatpush1.msra.mxu0 %v50
    %1160 = vmatprep.subr.mxu0 0.0
    %1161 = vmatpush1.msra.mxu0 %v51
    %1162 = vmatprep.subr.mxu0 0.0
    %1163 = vmatpush1.msra.mxu0 %v52
    %1164 = vmatprep.subr.mxu0 0.0
    %1165 = vmatpush1.msra.mxu0 0.0
    %1166 = vmatprep.subr.mxu0 0.0
    %1167 = vmatpush1.msra.mxu0 0.0
    %1168 = vmatprep.subr.mxu0 0.0
    %1169 = vmatpush1.msra.mxu0 0.0
    %1170 = vmatprep.subr.mxu0 0.0
    %1171 = vmatpush1.msra.mxu0 0.0
    %1172 = vmatprep.subr.mxu0 0.0
    %1173 = vmatpush1.msra.mxu0 0.0
    %1174 = vmatprep.subr.mxu0 0.0
    %1175 = vmatpush1.msra.mxu0 0.0
    %1176 = vmatprep.subr.mxu0 0.0
    %1177 = vmatpush1.msra.mxu0 0.0
    %1178 = vmatprep.subr.mxu0 0.0
    %1179 = vmatpush1.msra.mxu0 0.0
    %1180 = vmatprep.subr.mxu0 0.0
    %1181 = vmatpush1.msra.mxu0 0.0
    %1182 = vmatprep.subr.mxu0 0.0
    %1183 = vmatpush1.msra.mxu0 0.0
    %1184 = vmatprep.subr.mxu0 0.0
    %1185 = vmatpush1.msra.mxu0 0.0
    %1186 = vmatprep.subr.mxu0 0.0
    %1187 = vmatpush1.msra.mxu0 0.0
    %1188 = vmatprep.subr.mxu0 0.0
    %1189 = vmatpush1.msra.mxu0 0.0
    %1190 = vmatprep.subr.mxu0 0.0
    %1191 = vmatpush1.msra.mxu0 0.0
    %1192 = vmatprep.subr.mxu0 0.0
    %1193 = vmatpush1.msra.mxu0 0.0
    %1194 = vmatprep.subr.mxu0 0.0
    %1195 = vmatpush1.msra.mxu0 0.0
    %1196 = vmatprep.subr.mxu0 0.0
    %1197 = vmatpush1.msra.mxu0 0.0
    %1198 = vmatprep.subr.mxu0 0.0
    %1199 = vmatpush1.msra.mxu0 0.0
    %1200 = vmatprep.subr.mxu0 0.0
    %1201 = vmatpush1.msra.mxu0 0.0
    %1202 = vmatprep.subr.mxu0 0.0
    %1203 = vmatpush1.msra.mxu0 0.0
    %1204 = vmatprep.subr.mxu0 0.0
    %1205 = vmatpush1.msra.mxu0 0.0
    %1206 = vmatprep.subr.mxu0 0.0
    %1207 = vmatpush1.msra.mxu0 0.0
    %1208 = vmatprep.subr.mxu0 0.0
    %1209 = vmatpush1.msra.mxu0 0.0
    %1210 = vmatprep.subr.mxu0 0.0
    %1211 = vmatpush1.msra.mxu0 0.0
    %1212 = vmatprep.subr.mxu0 0.0
    %1213 = vmatpush1.msra.mxu0 0.0
    %1214 = vmatprep.subr.mxu0 0.0
    %1215 = vmatpush1.msra.mxu0 0.0
    %1216 = vmatprep.subr.mxu0 0.0
    %1217 = vmatpush1.msra.mxu0 0.0
    %1218 = vmatprep.subr.mxu0 0.0
    %1219 = vmatpush1.msra.mxu0 0.0
    %1220 = vmatprep.mubr.f32.mxu0 0.0
    %1221 = vmatmul.mubr.f32.gmra.mrb[0].mxu0 %v1154
    %v1222 = vpop.f32.mrb[0].mxu0
    %v1223 = vadd.f32 0.0, %v1222
    %v1224 = vpop.f32.mrb[0].mxu0
    %1225 = vdwg.mxu0
    %v1227 = vrot.slane %v1223, 6
    %v1229 = vadd.f32 %v1043, %v1227
    %v1230 = vxor.u32 %v1229, 2147483648
    %v1231 = vmul.f32 %v1230, 1.442695
    %v1232 = vpow.pop %v1231
    %v1233 = vadd.f32 %v1232, 1.0
    %v1234 = vrcp.pop %v1233
    %v1235 = vmul.f32 1.0, %v1234
    %v1236 = vtanh.pop %v1229
    %v1238 = vrot.slane %v1144, 6
    %v1240 = vmul.f32 %v1235, %v1238
    %1242 = vrot.lane.b32.xlu0 %v1236, 32
    %v1243 = vpop.permute.xlu0 %1242
    %v1245 = vmul.f32 %v1235, %v1243
    %1247 = vrot.lane.b32.xlu0 %v1245, 32
    %v1248 = vpop.permute.xlu0 %1247
    %v1250 = vadd.f32 %v1240, %v1248
    %v1251 = vtanh.pop %v1250
    %1253 = vrot.lane.b32.xlu0 %v1251, 32
    %v1254 = vpop.permute.xlu0 %1253
    %v1256 = vmul.f32 %v1235, %v1254
    %v1258 = vrot.slane %v1256, 2
    %1259 = vrot.lane.b32.xlu0 %v1258, 64
    %v1260 = vpop.permute.xlu0 %1259
    %v1261 = vsel %vm141, %v1260, 0
    %1263 = vmatprep.subr.mxu0 0.0
    %1264 = vmatpush1.msra.mxu0 %v49
    %1265 = vmatprep.subr.mxu0 0.0
    %1266 = vmatpush1.msra.mxu0 %v50
    %1267 = vmatprep.subr.mxu0 0.0
    %1268 = vmatpush1.msra.mxu0 %v51
    %1269 = vmatprep.subr.mxu0 0.0
    %1270 = vmatpush1.msra.mxu0 %v52
    %1271 = vmatprep.subr.mxu0 0.0
    %1272 = vmatpush1.msra.mxu0 0.0
    %1273 = vmatprep.subr.mxu0 0.0
    %1274 = vmatpush1.msra.mxu0 0.0
    %1275 = vmatprep.subr.mxu0 0.0
    %1276 = vmatpush1.msra.mxu0 0.0
    %1277 = vmatprep.subr.mxu0 0.0
    %1278 = vmatpush1.msra.mxu0 0.0
    %1279 = vmatprep.subr.mxu0 0.0
    %1280 = vmatpush1.msra.mxu0 0.0
    %1281 = vmatprep.subr.mxu0 0.0
    %1282 = vmatpush1.msra.mxu0 0.0
    %1283 = vmatprep.subr.mxu0 0.0
    %1284 = vmatpush1.msra.mxu0 0.0
    %1285 = vmatprep.subr.mxu0 0.0
    %1286 = vmatpush1.msra.mxu0 0.0
    %1287 = vmatprep.subr.mxu0 0.0
    %1288 = vmatpush1.msra.mxu0 0.0
    %1289 = vmatprep.subr.mxu0 0.0
    %1290 = vmatpush1.msra.mxu0 0.0
    %1291 = vmatprep.subr.mxu0 0.0
    %1292 = vmatpush1.msra.mxu0 0.0
    %1293 = vmatprep.subr.mxu0 0.0
    %1294 = vmatpush1.msra.mxu0 0.0
    %1295 = vmatprep.subr.mxu0 0.0
    %1296 = vmatpush1.msra.mxu0 0.0
    %1297 = vmatprep.subr.mxu0 0.0
    %1298 = vmatpush1.msra.mxu0 0.0
    %1299 = vmatprep.subr.mxu0 0.0
    %1300 = vmatpush1.msra.mxu0 0.0
    %1301 = vmatprep.subr.mxu0 0.0
    %1302 = vmatpush1.msra.mxu0 0.0
    %1303 = vmatprep.subr.mxu0 0.0
    %1304 = vmatpush1.msra.mxu0 0.0
    %1305 = vmatprep.subr.mxu0 0.0
    %1306 = vmatpush1.msra.mxu0 0.0
    %1307 = vmatprep.subr.mxu0 0.0
    %1308 = vmatpush1.msra.mxu0 0.0
    %1309 = vmatprep.subr.mxu0 0.0
    %1310 = vmatpush1.msra.mxu0 0.0
    %1311 = vmatprep.subr.mxu0 0.0
    %1312 = vmatpush1.msra.mxu0 0.0
    %1313 = vmatprep.subr.mxu0 0.0
    %1314 = vmatpush1.msra.mxu0 0.0
    %1315 = vmatprep.subr.mxu0 0.0
    %1316 = vmatpush1.msra.mxu0 0.0
    %1317 = vmatprep.subr.mxu0 0.0
    %1318 = vmatpush1.msra.mxu0 0.0
    %1319 = vmatprep.subr.mxu0 0.0
    %1320 = vmatpush1.msra.mxu0 0.0
    %1321 = vmatprep.subr.mxu0 0.0
    %1322 = vmatpush1.msra.mxu0 0.0
    %1323 = vmatprep.subr.mxu0 0.0
    %1324 = vmatpush1.msra.mxu0 0.0
    %1325 = vmatprep.subr.mxu0 0.0
    %1326 = vmatpush1.msra.mxu0 0.0
    %1327 = vmatprep.mubr.f32.mxu0 0.0
    %1328 = vmatmul.mubr.f32.gmra.mrb[0].mxu0 %v1261
    %v1329 = vpop.f32.mrb[0].mxu0
    %v1330 = vadd.f32 0.0, %v1329
    %v1331 = vpop.f32.mrb[0].mxu0
    %1332 = vdwg.mxu0
    %v1334 = vrot.slane %v1330, 4
    %v1336 = vadd.f32 %v1043, %v1334
    %v1337 = vxor.u32 %v1336, 2147483648
    %v1338 = vmul.f32 %v1337, 1.442695
    %v1339 = vpow.pop %v1338
    %v1340 = vadd.f32 %v1339, 1.0
    %v1341 = vrcp.pop %v1340
    %v1342 = vmul.f32 1.0, %v1341
    %v1343 = vtanh.pop %v1336
    %v1345 = vrot.slane %v1250, 6
    %v1347 = vmul.f32 %v1342, %v1345
    %1349 = vrot.lane.b32.xlu0 %v1343, 32
    %v1350 = vpop.permute.xlu0 %1349
    %v1352 = vmul.f32 %v1342, %v1350
    %1354 = vrot.lane.b32.xlu0 %v1352, 32
    %v1355 = vpop.permute.xlu0 %1354
    %v1357 = vadd.f32 %v1347, %v1355
    %v1358 = vtanh.pop %v1357
    %1360 = vrot.lane.b32.xlu0 %v1358, 32
    %v1361 = vpop.permute.xlu0 %1360
    %v1363 = vmul.f32 %v1342, %v1361
    %v1365 = vrot.slane %v1363, 4
    %1366 = vrot.lane.b32.xlu0 %v1365, 64
    %v1367 = vpop.permute.xlu0 %1366
    %v1368 = vsel %vm141, %v1367, 0
    %1370 = vmatprep.subr.mxu0 0.0
    %1371 = vmatpush1.msra.mxu0 %v49
    %1372 = vmatprep.subr.mxu0 0.0
    %1373 = vmatpush1.msra.mxu0 %v50
    %1374 = vmatprep.subr.mxu0 0.0
    %1375 = vmatpush1.msra.mxu0 %v51
    %1376 = vmatprep.subr.mxu0 0.0
    %1377 = vmatpush1.msra.mxu0 %v52
    %1378 = vmatprep.subr.mxu0 0.0
    %1379 = vmatpush1.msra.mxu0 0.0
    %1380 = vmatprep.subr.mxu0 0.0
    %1381 = vmatpush1.msra.mxu0 0.0
    %1382 = vmatprep.subr.mxu0 0.0
    %1383 = vmatpush1.msra.mxu0 0.0
    %1384 = vmatprep.subr.mxu0 0.0
    %1385 = vmatpush1.msra.mxu0 0.0
    %1386 = vmatprep.subr.mxu0 0.0
    %1387 = vmatpush1.msra.mxu0 0.0
    %1388 = vmatprep.subr.mxu0 0.0
    %1389 = vmatpush1.msra.mxu0 0.0
    %1390 = vmatprep.subr.mxu0 0.0
    %1391 = vmatpush1.msra.mxu0 0.0
    %1392 = vmatprep.subr.mxu0 0.0
    %1393 = vmatpush1.msra.mxu0 0.0
    %1394 = vmatprep.subr.mxu0 0.0
    %1395 = vmatpush1.msra.mxu0 0.0
    %1396 = vmatprep.subr.mxu0 0.0
    %1397 = vmatpush1.msra.mxu0 0.0
    %1398 = vmatprep.subr.mxu0 0.0
    %1399 = vmatpush1.msra.mxu0 0.0
    %1400 = vmatprep.subr.mxu0 0.0
    %1401 = vmatpush1.msra.mxu0 0.0
    %1402 = vmatprep.subr.mxu0 0.0
    %1403 = vmatpush1.msra.mxu0 0.0
    %1404 = vmatprep.subr.mxu0 0.0
    %1405 = vmatpush1.msra.mxu0 0.0
    %1406 = vmatprep.subr.mxu0 0.0
    %1407 = vmatpush1.msra.mxu0 0.0
    %1408 = vmatprep.subr.mxu0 0.0
    %1409 = vmatpush1.msra.mxu0 0.0
    %1410 = vmatprep.subr.mxu0 0.0
    %1411 = vmatpush1.msra.mxu0 0.0
    %1412 = vmatprep.subr.mxu0 0.0
    %1413 = vmatpush1.msra.mxu0 0.0
    %1414 = vmatprep.subr.mxu0 0.0
    %1415 = vmatpush1.msra.mxu0 0.0
    %1416 = vmatprep.subr.mxu0 0.0
    %1417 = vmatpush1.msra.mxu0 0.0
    %1418 = vmatprep.subr.mxu0 0.0
    %1419 = vmatpush1.msra.mxu0 0.0
    %1420 = vmatprep.subr.mxu0 0.0
    %1421 = vmatpush1.msra.mxu0 0.0
    %1422 = vmatprep.subr.mxu0 0.0
    %1423 = vmatpush1.msra.mxu0 0.0
    %1424 = vmatprep.subr.mxu0 0.0
    %1425 = vmatpush1.msra.mxu0 0.0
    %1426 = vmatprep.subr.mxu0 0.0
    %1427 = vmatpush1.msra.mxu0 0.0
    %1428 = vmatprep.subr.mxu0 0.0
    %1429 = vmatpush1.msra.mxu0 0.0
    %1430 = vmatprep.subr.mxu0 0.0
    %1431 = vmatpush1.msra.mxu0 0.0
    %1432 = vmatprep.subr.mxu0 0.0
    %1433 = vmatpush1.msra.mxu0 0.0
    %1434 = vmatprep.mubr.f32.mxu0 0.0
    %1435 = vmatmul.mubr.f32.gmra.mrb[0].mxu0 %v1368
    %v1436 = vpop.f32.mrb[0].mxu0
    %v1437 = vadd.f32 0.0, %v1436
    %v1438 = vpop.f32.mrb[0].mxu0
    %1439 = vdwg.mxu0
    %v1441 = vrot.slane %v1437, 2
    %v1443 = vadd.f32 %v1043, %v1441
    %v1444 = vxor.u32 %v1443, 2147483648
    %v1445 = vmul.f32 %v1444, 1.442695
    %v1446 = vpow.pop %v1445
    %v1447 = vadd.f32 %v1446, 1.0
    %v1448 = vrcp.pop %v1447
    %v1449 = vmul.f32 1.0, %v1448
    %v1450 = vtanh.pop %v1443
    %v1452 = vrot.slane %v1357, 6
    %v1454 = vmul.f32 %v1449, %v1452
    %1456 = vrot.lane.b32.xlu0 %v1450, 32
    %v1457 = vpop.permute.xlu0 %1456
    %v1459 = vmul.f32 %v1449, %v1457
    %1461 = vrot.lane.b32.xlu0 %v1459, 32
    %v1462 = vpop.permute.xlu0 %1461
    %v1464 = vadd.f32 %v1454, %v1462
    %v1465 = vtanh.pop %v1464
    %1467 = vrot.lane.b32.xlu0 %v1465, 32
    %v1468 = vpop.permute.xlu0 %1467
    %v1470 = vmul.f32 %v1449, %v1468
    %v1472 = vrot.slane %v1470, 6
    %1473 = vrot.lane.b32.xlu0 %v1472, 64
    %v1474 = vpop.permute.xlu0 %1473
    %v1475 = vsel %vm141, %v1474, 0
    %1477 = vmatprep.subr.mxu0 0.0
    %1478 = vmatpush1.msra.mxu0 %v49
    %1479 = vmatprep.subr.mxu0 0.0
    %1480 = vmatpush1.msra.mxu0 %v50
    %1481 = vmatprep.subr.mxu0 0.0
    %1482 = vmatpush1.msra.mxu0 %v51
    %1483 = vmatprep.subr.mxu0 0.0
    %1484 = vmatpush1.msra.mxu0 %v52
    %1485 = vmatprep.subr.mxu0 0.0
    %1486 = vmatpush1.msra.mxu0 0.0
    %1487 = vmatprep.subr.mxu0 0.0
    %1488 = vmatpush1.msra.mxu0 0.0
    %1489 = vmatprep.subr.mxu0 0.0
    %1490 = vmatpush1.msra.mxu0 0.0
    %1491 = vmatprep.subr.mxu0 0.0
    %1492 = vmatpush1.msra.mxu0 0.0
    %1493 = vmatprep.subr.mxu0 0.0
    %1494 = vmatpush1.msra.mxu0 0.0
    %1495 = vmatprep.subr.mxu0 0.0
    %1496 = vmatpush1.msra.mxu0 0.0
    %1497 = vmatprep.subr.mxu0 0.0
    %1498 = vmatpush1.msra.mxu0 0.0
    %1499 = vmatprep.subr.mxu0 0.0
    %1500 = vmatpush1.msra.mxu0 0.0
    %1501 = vmatprep.subr.mxu0 0.0
    %1502 = vmatpush1.msra.mxu0 0.0
    %1503 = vmatprep.subr.mxu0 0.0
    %1504 = vmatpush1.msra.mxu0 0.0
    %1505 = vmatprep.subr.mxu0 0.0
    %1506 = vmatpush1.msra.mxu0 0.0
    %1507 = vmatprep.subr.mxu0 0.0
    %1508 = vmatpush1.msra.mxu0 0.0
    %1509 = vmatprep.subr.mxu0 0.0
    %1510 = vmatpush1.msra.mxu0 0.0
    %1511 = vmatprep.subr.mxu0 0.0
    %1512 = vmatpush1.msra.mxu0 0.0
    %1513 = vmatprep.subr.mxu0 0.0
    %1514 = vmatpush1.msra.mxu0 0.0
    %1515 = vmatprep.subr.mxu0 0.0
    %1516 = vmatpush1.msra.mxu0 0.0
    %1517 = vmatprep.subr.mxu0 0.0
    %1518 = vmatpush1.msra.mxu0 0.0
    %1519 = vmatprep.subr.mxu0 0.0
    %1520 = vmatpush1.msra.mxu0 0.0
    %1521 = vmatprep.subr.mxu0 0.0
    %1522 = vmatpush1.msra.mxu0 0.0
    %1523 = vmatprep.subr.mxu0 0.0
    %1524 = vmatpush1.msra.mxu0 0.0
    %1525 = vmatprep.subr.mxu0 0.0
    %1526 = vmatpush1.msra.mxu0 0.0
    %1527 = vmatprep.subr.mxu0 0.0
    %1528 = vmatpush1.msra.mxu0 0.0
    %1529 = vmatprep.subr.mxu0 0.0
    %1530 = vmatpush1.msra.mxu0 0.0
    %1531 = vmatprep.subr.mxu0 0.0
    %1532 = vmatpush1.msra.mxu0 0.0
    %1533 = vmatprep.subr.mxu0 0.0
    %1534 = vmatpush1.msra.mxu0 0.0
    %1535 = vmatprep.subr.mxu0 0.0
    %1536 = vmatpush1.msra.mxu0 0.0
    %1537 = vmatprep.subr.mxu0 0.0
    %1538 = vmatpush1.msra.mxu0 0.0
    %1539 = vmatprep.subr.mxu0 0.0
    %1540 = vmatpush1.msra.mxu0 0.0
    %1541 = vmatprep.mubr.f32.mxu0 0.0
    %1542 = vmatmul.mubr.f32.gmra.mrb[0].mxu0 %v1475
    %v1543 = vpop.f32.mrb[0].mxu0
    %v1544 = vadd.f32 0.0, %v1543
    %v1545 = vpop.f32.mrb[0].mxu0
    %1546 = vdwg.mxu0
    %v1547 = vadd.f32 %v1048, %v1544
    %v1548 = vxor.u32 %v1547, 2147483648
    %v1549 = vmul.f32 %v1548, 1.442695
    %v1550 = vpow.pop %v1549
    %v1551 = vadd.f32 %v1550, 1.0
    %v1552 = vrcp.pop %v1551
    %v1553 = vmul.f32 1.0, %v1552
    %v1554 = vtanh.pop %v1547
    %v1556 = vrot.slane %v1464, 6
    %v1558 = vmul.f32 %v1553, %v1556
    %1560 = vrot.lane.b32.xlu0 %v1554, 32
    %v1561 = vpop.permute.xlu0 %1560
    %v1563 = vmul.f32 %v1553, %v1561
    %1565 = vrot.lane.b32.xlu0 %v1563, 32
    %v1566 = vpop.permute.xlu0 %1565
    %v1568 = vadd.f32 %v1558, %v1566
    %v1569 = vtanh.pop %v1568
    %1571 = vrot.lane.b32.xlu0 %v1569, 32
    %v1572 = vpop.permute.xlu0 %1571
    %v1574 = vmul.f32 %v1553, %v1572
    %1576 = vrot.lane.b32.xlu0 %v1574, 64
    %v1577 = vpop.permute.xlu0 %1576
    %v1578 = vsel %vm141, %v1577, 0
    %1580 = vmatprep.subr.mxu0 0.0
    %1581 = vmatpush1.msra.mxu0 %v49
    %1582 = vmatprep.subr.mxu0 0.0
    %1583 = vmatpush1.msra.mxu0 %v50
    %1584 = vmatprep.subr.mxu0 0.0
    %1585 = vmatpush1.msra.mxu0 %v51
    %1586 = vmatprep.subr.mxu0 0.0
    %1587 = vmatpush1.msra.mxu0 %v52
    %1588 = vmatprep.subr.mxu0 0.0
    %1589 = vmatpush1.msra.mxu0 0.0
    %1590 = vmatprep.subr.mxu0 0.0
    %1591 = vmatpush1.msra.mxu0 0.0
    %1592 = vmatprep.subr.mxu0 0.0
    %1593 = vmatpush1.msra.mxu0 0.0
    %1594 = vmatprep.subr.mxu0 0.0
    %1595 = vmatpush1.msra.mxu0 0.0
    %1596 = vmatprep.subr.mxu0 0.0
    %1597 = vmatpush1.msra.mxu0 0.0
    %1598 = vmatprep.subr.mxu0 0.0
    %1599 = vmatpush1.msra.mxu0 0.0
    %1600 = vmatprep.subr.mxu0 0.0
    %1601 = vmatpush1.msra.mxu0 0.0
    %1602 = vmatprep.subr.mxu0 0.0
    %1603 = vmatpush1.msra.mxu0 0.0
    %1604 = vmatprep.subr.mxu0 0.0
    %1605 = vmatpush1.msra.mxu0 0.0
    %1606 = vmatprep.subr.mxu0 0.0
    %1607 = vmatpush1.msra.mxu0 0.0
    %1608 = vmatprep.subr.mxu0 0.0
    %1609 = vmatpush1.msra.mxu0 0.0
    %1610 = vmatprep.subr.mxu0 0.0
    %1611 = vmatpush1.msra.mxu0 0.0
    %1612 = vmatprep.subr.mxu0 0.0
    %1613 = vmatpush1.msra.mxu0 0.0
    %1614 = vmatprep.subr.mxu0 0.0
    %1615 = vmatpush1.msra.mxu0 0.0
    %1616 = vmatprep.subr.mxu0 0.0
    %1617 = vmatpush1.msra.mxu0 0.0
    %1618 = vmatprep.subr.mxu0 0.0
    %1619 = vmatpush1.msra.mxu0 0.0
    %1620 = vmatprep.subr.mxu0 0.0
    %1621 = vmatpush1.msra.mxu0 0.0
    %1622 = vmatprep.subr.mxu0 0.0
    %1623 = vmatpush1.msra.mxu0 0.0
    %1624 = vmatprep.subr.mxu0 0.0
    %1625 = vmatpush1.msra.mxu0 0.0
    %1626 = vmatprep.subr.mxu0 0.0
    %1627 = vmatpush1.msra.mxu0 0.0
    %1628 = vmatprep.subr.mxu0 0.0
    %1629 = vmatpush1.msra.mxu0 0.0
    %1630 = vmatprep.subr.mxu0 0.0
    %1631 = vmatpush1.msra.mxu0 0.0
    %1632 = vmatprep.subr.mxu0 0.0
    %1633 = vmatpush1.msra.mxu0 0.0
    %1634 = vmatprep.subr.mxu0 0.0
    %1635 = vmatpush1.msra.mxu0 0.0
    %1636 = vmatprep.subr.mxu0 0.0
    %1637 = vmatpush1.msra.mxu0 0.0
    %1638 = vmatprep.subr.mxu0 0.0
    %1639 = vmatpush1.msra.mxu0 0.0
    %1640 = vmatprep.subr.mxu0 0.0
    %1641 = vmatpush1.msra.mxu0 0.0
    %1642 = vmatprep.subr.mxu0 0.0
    %1643 = vmatpush1.msra.mxu0 0.0
    %1644 = vmatprep.mubr.f32.mxu0 0.0
    %1645 = vmatmul.mubr.f32.gmra.mrb[0].mxu0 %v1578
    %v1646 = vpop.f32.mrb[0].mxu0
    %v1647 = vadd.f32 0.0, %v1646
    %v1648 = vpop.f32.mrb[0].mxu0
    %1649 = vdwg.mxu0
    %v1651 = vrot.slane %v1647, 6
    %v1653 = vadd.f32 %v1048, %v1651
    %v1654 = vxor.u32 %v1653, 2147483648
    %v1655 = vmul.f32 %v1654, 1.442695
    %v1656 = vpow.pop %v1655
    %v1657 = vadd.f32 %v1656, 1.0
    %v1658 = vrcp.pop %v1657
    %v1659 = vmul.f32 1.0, %v1658
    %v1660 = vtanh.pop %v1653
    %v1662 = vrot.slane %v1568, 6
    %v1664 = vmul.f32 %v1659, %v1662
    %1666 = vrot.lane.b32.xlu0 %v1660, 32
    %v1667 = vpop.permute.xlu0 %1666
    %v1669 = vmul.f32 %v1659, %v1667
    %1671 = vrot.lane.b32.xlu0 %v1669, 32
    %v1672 = vpop.permute.xlu0 %1671
    %v1674 = vadd.f32 %v1664, %v1672
    %v1675 = vtanh.pop %v1674
    %1677 = vrot.lane.b32.xlu0 %v1675, 32
    %v1678 = vpop.permute.xlu0 %1677
    %v1680 = vmul.f32 %v1659, %v1678
    %v1682 = vrot.slane %v1680, 2
    %1683 = vrot.lane.b32.xlu0 %v1682, 64
    %v1684 = vpop.permute.xlu0 %1683
    %v1685 = vsel %vm141, %v1684, 0
    %1687 = vmatprep.subr.mxu0 0.0
    %1688 = vmatpush1.msra.mxu0 %v49
    %1689 = vmatprep.subr.mxu0 0.0
    %1690 = vmatpush1.msra.mxu0 %v50
    %1691 = vmatprep.subr.mxu0 0.0
    %1692 = vmatpush1.msra.mxu0 %v51
    %1693 = vmatprep.subr.mxu0 0.0
    %1694 = vmatpush1.msra.mxu0 %v52
    %1695 = vmatprep.subr.mxu0 0.0
    %1696 = vmatpush1.msra.mxu0 0.0
    %1697 = vmatprep.subr.mxu0 0.0
    %1698 = vmatpush1.msra.mxu0 0.0
    %1699 = vmatprep.subr.mxu0 0.0
    %1700 = vmatpush1.msra.mxu0 0.0
    %1701 = vmatprep.subr.mxu0 0.0
    %1702 = vmatpush1.msra.mxu0 0.0
    %1703 = vmatprep.subr.mxu0 0.0
    %1704 = vmatpush1.msra.mxu0 0.0
    %1705 = vmatprep.subr.mxu0 0.0
    %1706 = vmatpush1.msra.mxu0 0.0
    %1707 = vmatprep.subr.mxu0 0.0
    %1708 = vmatpush1.msra.mxu0 0.0
    %1709 = vmatprep.subr.mxu0 0.0
    %1710 = vmatpush1.msra.mxu0 0.0
    %1711 = vmatprep.subr.mxu0 0.0
    %1712 = vmatpush1.msra.mxu0 0.0
    %1713 = vmatprep.subr.mxu0 0.0
    %1714 = vmatpush1.msra.mxu0 0.0
    %1715 = vmatprep.subr.mxu0 0.0
    %1716 = vmatpush1.msra.mxu0 0.0
    %1717 = vmatprep.subr.mxu0 0.0
    %1718 = vmatpush1.msra.mxu0 0.0
    %1719 = vmatprep.subr.mxu0 0.0
    %1720 = vmatpush1.msra.mxu0 0.0
    %1721 = vmatprep.subr.mxu0 0.0
    %1722 = vmatpush1.msra.mxu0 0.0
    %1723 = vmatprep.subr.mxu0 0.0
    %1724 = vmatpush1.msra.mxu0 0.0
    %1725 = vmatprep.subr.mxu0 0.0
    %1726 = vmatpush1.msra.mxu0 0.0
    %1727 = vmatprep.subr.mxu0 0.0
    %1728 = vmatpush1.msra.mxu0 0.0
    %1729 = vmatprep.subr.mxu0 0.0
    %1730 = vmatpush1.msra.mxu0 0.0
    %1731 = vmatprep.subr.mxu0 0.0
    %1732 = vmatpush1.msra.mxu0 0.0
    %1733 = vmatprep.subr.mxu0 0.0
    %1734 = vmatpush1.msra.mxu0 0.0
    %1735 = vmatprep.subr.mxu0 0.0
    %1736 = vmatpush1.msra.mxu0 0.0
    %1737 = vmatprep.subr.mxu0 0.0
    %1738 = vmatpush1.msra.mxu0 0.0
    %1739 = vmatprep.subr.mxu0 0.0
    %1740 = vmatpush1.msra.mxu0 0.0
    %1741 = vmatprep.subr.mxu0 0.0
    %1742 = vmatpush1.msra.mxu0 0.0
    %1743 = vmatprep.subr.mxu0 0.0
    %1744 = vmatpush1.msra.mxu0 0.0
    %1745 = vmatprep.subr.mxu0 0.0
    %1746 = vmatpush1.msra.mxu0 0.0
    %1747 = vmatprep.subr.mxu0 0.0
    %1748 = vmatpush1.msra.mxu0 0.0
    %1749 = vmatprep.subr.mxu0 0.0
    %1750 = vmatpush1.msra.mxu0 0.0
    %1751 = vmatprep.mubr.f32.mxu0 0.0
    %1752 = vmatmul.mubr.f32.gmra.mrb[0].mxu0 %v1685
    %v1753 = vpop.f32.mrb[0].mxu0
    %v1754 = vadd.f32 0.0, %v1753
    %v1755 = vpop.f32.mrb[0].mxu0
    %1756 = vdwg.mxu0
    %v1758 = vrot.slane %v1754, 4
    %v1760 = vadd.f32 %v1048, %v1758
    %v1761 = vxor.u32 %v1760, 2147483648
    %v1762 = vmul.f32 %v1761, 1.442695
    %v1763 = vpow.pop %v1762
    %v1764 = vadd.f32 %v1763, 1.0
    %v1765 = vrcp.pop %v1764
    %v1766 = vmul.f32 1.0, %v1765
    %v1767 = vtanh.pop %v1760
    %v1769 = vrot.slane %v1674, 6
    %v1771 = vmul.f32 %v1766, %v1769
    %1773 = vrot.lane.b32.xlu0 %v1767, 32
    %v1774 = vpop.permute.xlu0 %1773
    %v1776 = vmul.f32 %v1766, %v1774
    %1778 = vrot.lane.b32.xlu0 %v1776, 32
    %v1779 = vpop.permute.xlu0 %1778
    %v1781 = vadd.f32 %v1771, %v1779
    %v1782 = vtanh.pop %v1781
    %1784 = vrot.lane.b32.xlu0 %v1782, 32
    %v1785 = vpop.permute.xlu0 %1784
    %v1787 = vmul.f32 %v1766, %v1785
    %v1789 = vrot.slane %v1787, 4
    %1790 = vrot.lane.b32.xlu0 %v1789, 64
    %v1791 = vpop.permute.xlu0 %1790
    %v1792 = vsel %vm141, %v1791, 0
    %1794 = vmatprep.subr.mxu0 0.0
    %1795 = vmatpush1.msra.mxu0 %v49
    %1796 = vmatprep.subr.mxu0 0.0
    %1797 = vmatpush1.msra.mxu0 %v50
    %1798 = vmatprep.subr.mxu0 0.0
    %1799 = vmatpush1.msra.mxu0 %v51
    %1800 = vmatprep.subr.mxu0 0.0
    %1801 = vmatpush1.msra.mxu0 %v52
    %1802 = vmatprep.subr.mxu0 0.0
    %1803 = vmatpush1.msra.mxu0 0.0
    %1804 = vmatprep.subr.mxu0 0.0
    %1805 = vmatpush1.msra.mxu0 0.0
    %1806 = vmatprep.subr.mxu0 0.0
    %1807 = vmatpush1.msra.mxu0 0.0
    %1808 = vmatprep.subr.mxu0 0.0
    %1809 = vmatpush1.msra.mxu0 0.0
    %1810 = vmatprep.subr.mxu0 0.0
    %1811 = vmatpush1.msra.mxu0 0.0
    %1812 = vmatprep.subr.mxu0 0.0
    %1813 = vmatpush1.msra.mxu0 0.0
    %1814 = vmatprep.subr.mxu0 0.0
    %1815 = vmatpush1.msra.mxu0 0.0
    %1816 = vmatprep.subr.mxu0 0.0
    %1817 = vmatpush1.msra.mxu0 0.0
    %1818 = vmatprep.subr.mxu0 0.0
    %1819 = vmatpush1.msra.mxu0 0.0
    %1820 = vmatprep.subr.mxu0 0.0
    %1821 = vmatpush1.msra.mxu0 0.0
    %1822 = vmatprep.subr.mxu0 0.0
    %1823 = vmatpush1.msra.mxu0 0.0
    %1824 = vmatprep.subr.mxu0 0.0
    %1825 = vmatpush1.msra.mxu0 0.0
    %1826 = vmatprep.subr.mxu0 0.0
    %1827 = vmatpush1.msra.mxu0 0.0
    %1828 = vmatprep.subr.mxu0 0.0
    %1829 = vmatpush1.msra.mxu0 0.0
    %1830 = vmatprep.subr.mxu0 0.0
    %1831 = vmatpush1.msra.mxu0 0.0
    %1832 = vmatprep.subr.mxu0 0.0
    %1833 = vmatpush1.msra.mxu0 0.0
    %1834 = vmatprep.subr.mxu0 0.0
    %1835 = vmatpush1.msra.mxu0 0.0
    %1836 = vmatprep.subr.mxu0 0.0
    %1837 = vmatpush1.msra.mxu0 0.0
    %1838 = vmatprep.subr.mxu0 0.0
    %1839 = vmatpush1.msra.mxu0 0.0
    %1840 = vmatprep.subr.mxu0 0.0
    %1841 = vmatpush1.msra.mxu0 0.0
    %1842 = vmatprep.subr.mxu0 0.0
    %1843 = vmatpush1.msra.mxu0 0.0
    %1844 = vmatprep.subr.mxu0 0.0
    %1845 = vmatpush1.msra.mxu0 0.0
    %1846 = vmatprep.subr.mxu0 0.0
    %1847 = vmatpush1.msra.mxu0 0.0
    %1848 = vmatprep.subr.mxu0 0.0
    %1849 = vmatpush1.msra.mxu0 0.0
    %1850 = vmatprep.subr.mxu0 0.0
    %1851 = vmatpush1.msra.mxu0 0.0
    %1852 = vmatprep.subr.mxu0 0.0
    %1853 = vmatpush1.msra.mxu0 0.0
    %1854 = vmatprep.subr.mxu0 0.0
    %1855 = vmatpush1.msra.mxu0 0.0
    %1856 = vmatprep.subr.mxu0 0.0
    %1857 = vmatpush1.msra.mxu0 0.0
    %1858 = vmatprep.mubr.f32.mxu0 0.0
    %1859 = vmatmul.mubr.f32.gmra.mrb[0].mxu0 %v1792
    %v1860 = vpop.f32.mrb[0].mxu0
    %v1861 = vadd.f32 0.0, %v1860
    %v1862 = vpop.f32.mrb[0].mxu0
    %1863 = vdwg.mxu0
    %v1865 = vrot.slane %v1861, 2
    %v1867 = vadd.f32 %v1048, %v1865
    %v1868 = vxor.u32 %v1867, 2147483648
    %v1869 = vmul.f32 %v1868, 1.442695
    %v1870 = vpow.pop %v1869
    %v1871 = vadd.f32 %v1870, 1.0
    %v1872 = vrcp.pop %v1871
    %v1873 = vmul.f32 1.0, %v1872
    %v1874 = vtanh.pop %v1867
    %v1876 = vrot.slane %v1781, 6
    %v1878 = vmul.f32 %v1873, %v1876
    %1880 = vrot.lane.b32.xlu0 %v1874, 32
    %v1881 = vpop.permute.xlu0 %1880
    %v1883 = vmul.f32 %v1873, %v1881
    %1885 = vrot.lane.b32.xlu0 %v1883, 32
    %v1886 = vpop.permute.xlu0 %1885
    %v1888 = vadd.f32 %v1878, %v1886
    %v1889 = vtanh.pop %v1888
    %1891 = vrot.lane.b32.xlu0 %v1889, 32
    %v1892 = vpop.permute.xlu0 %1891
    %v1894 = vmul.f32 %v1873, %v1892
    %v1895 = vlaneseq
    %v1896 = vshrl.u32 %v1895, 7
    %v1897 = vsub.s32 0, %v1896
    %v1898 = vrot.slane %v58, %v1897
    %v1900 = vrot.slane %v1894, 6
    %1901 = vrot.lane.b32.xlu0 %v1900, 64
    %v1902 = vpop.permute.xlu0 %1901
    %v1903 = vsel %vm141, %v1902, 0
    %1905 = vmatprep.subr.mxu0 0.0
    %1906 = vmatpush1.msra.mxu0 %v54
    %1907 = vmatprep.subr.mxu0 0.0
    %1908 = vmatpush1.msra.mxu0 %v55
    %1909 = vmatprep.subr.mxu0 0.0
    %1910 = vmatpush1.msra.mxu0 %v56
    %1911 = vmatprep.subr.mxu0 0.0
    %1912 = vmatpush1.msra.mxu0 %v57
    %1913 = vmatprep.subr.mxu0 0.0
    %1914 = vmatpush1.msra.mxu0 0.0
    %1915 = vmatprep.subr.mxu0 0.0
    %1916 = vmatpush1.msra.mxu0 0.0
    %1917 = vmatprep.subr.mxu0 0.0
    %1918 = vmatpush1.msra.mxu0 0.0
    %1919 = vmatprep.subr.mxu0 0.0
    %1920 = vmatpush1.msra.mxu0 0.0
    %1921 = vmatprep.subr.mxu0 0.0
    %1922 = vmatpush1.msra.mxu0 0.0
    %1923 = vmatprep.subr.mxu0 0.0
    %1924 = vmatpush1.msra.mxu0 0.0
    %1925 = vmatprep.subr.mxu0 0.0
    %1926 = vmatpush1.msra.mxu0 0.0
    %1927 = vmatprep.subr.mxu0 0.0
    %1928 = vmatpush1.msra.mxu0 0.0
    %1929 = vmatprep.subr.mxu0 0.0
    %1930 = vmatpush1.msra.mxu0 0.0
    %1931 = vmatprep.subr.mxu0 0.0
    %1932 = vmatpush1.msra.mxu0 0.0
    %1933 = vmatprep.subr.mxu0 0.0
    %1934 = vmatpush1.msra.mxu0 0.0
    %1935 = vmatprep.subr.mxu0 0.0
    %1936 = vmatpush1.msra.mxu0 0.0
    %1937 = vmatprep.subr.mxu0 0.0
    %1938 = vmatpush1.msra.mxu0 0.0
    %1939 = vmatprep.subr.mxu0 0.0
    %1940 = vmatpush1.msra.mxu0 0.0
    %1941 = vmatprep.subr.mxu0 0.0
    %1942 = vmatpush1.msra.mxu0 0.0
    %1943 = vmatprep.subr.mxu0 0.0
    %1944 = vmatpush1.msra.mxu0 0.0
    %1945 = vmatprep.subr.mxu0 0.0
    %1946 = vmatpush1.msra.mxu0 0.0
    %1947 = vmatprep.subr.mxu0 0.0
    %1948 = vmatpush1.msra.mxu0 0.0
    %1949 = vmatprep.subr.mxu0 0.0
    %1950 = vmatpush1.msra.mxu0 0.0
    %1951 = vmatprep.subr.mxu0 0.0
    %1952 = vmatpush1.msra.mxu0 0.0
    %1953 = vmatprep.subr.mxu0 0.0
    %1954 = vmatpush1.msra.mxu0 0.0
    %1955 = vmatprep.subr.mxu0 0.0
    %1956 = vmatpush1.msra.mxu0 0.0
    %1957 = vmatprep.subr.mxu0 0.0
    %1958 = vmatpush1.msra.mxu0 0.0
    %1959 = vmatprep.subr.mxu0 0.0
    %1960 = vmatpush1.msra.mxu0 0.0
    %1961 = vmatprep.subr.mxu0 0.0
    %1962 = vmatpush1.msra.mxu0 0.0
    %1963 = vmatprep.subr.mxu0 0.0
    %1964 = vmatpush1.msra.mxu0 0.0
    %1965 = vmatprep.subr.mxu0 0.0
    %1966 = vmatpush1.msra.mxu0 0.0
    %1967 = vmatprep.subr.mxu0 0.0
    %1968 = vmatpush1.msra.mxu0 0.0
    %1969 = vmatprep.mubr.f32.mxu0 0.0
    %1970 = vmatmul.mubr.f32.gmra.mrb[0].mxu0 %v1903
    %v1971 = vpop.f32.mrb[0].mxu0
    %v1972 = vadd.f32 %v1898, %v1971
    %v1973 = vpop.f32.mrb[0].mxu0
    %1974 = vdwg.mxu0
    %v1975 = vxor.u32 %v1972, 2147483648
    %v1976 = vmul.f32 %v1975, 1.442695
    %v1977 = vpow.pop %v1976
    %v1978 = vadd.f32 %v1977, 1.0
    %v1979 = vrcp.pop %v1978
    %v1980 = vmul.f32 1.0, %v1979
    %1981 = vrot.lane.b32.xlu0 %v939, 64
    %v1982 = vpop.permute.xlu0 %1981
    %v1986 = vrot.slane %v1888, 6
    %1987 = vrot.lane.b32.xlu0 %v1986, 64
    %v1988 = vpop.permute.xlu0 %1987
    %v1990 = vsel %vm141, %v1982, %v933
    %vm1991 = vcmask 523264
    %v1992 = vsel %vm1991, %v1990, %v1900
    %vm1993 = vcmask 785408
    %v1994 = vsel %vm1993, %v1992, %v1988
    %v1996 = vrot.slane %v1980, 6
    %v1998 = vsel %vm953, %v1994, %v1996
    %v1999 = vsel %vm955, %v1998, 0.0
    %2000 = vst [vmem:[%s3] sm:$0xff] %v1999
    // Predicated region
    $region22: #{sentiment_rnn_forward.1} parent=1 // pred_check
      _
    $region23: #{sentiment_rnn_forward.1} parent=1 // pred_check_branch
      %2002 = sbr.rel (0) target = $region25
    $region24: #{sentiment_rnn_forward.1} parent=1 // pred_region
      _
    $region25: #{sentiment_rnn_forward.1} parent=1 // pred_fallthru
      _
    // Predicated region
    $region26: #{sentiment_rnn_forward.1} parent=1 // pred_check
      _
    $region27: #{sentiment_rnn_forward.1} parent=1 // pred_check_branch
      %2004 = sbr.rel (0) target = $region29
    $region28: #{sentiment_rnn_forward.1} parent=1 // pred_region
      _
    $region29: #{sentiment_rnn_forward.1} parent=1 // pred_fallthru
      _
    %2005 = vsyncpa [#allocation3], 1
    %2006 = vsyncpa [#allocation4], 1

</llo_original>
